<compile_context>
chip_gen: v5e
topology: v5e:2x2
jax: 0.10.0
libtpu: 0.0.40
codegen_flags: <defaults>
</compile_context>

<pallas_src>
import functools

import jax
import jax.numpy as jnp
from jax.experimental import pallas as pl
from jax.experimental.pallas import tpu as pltpu


# --------------------------------------------------------------------------
# Fused kernel (single invocation, whole batch):
#   v_  = ReLU(v @ Wv_a + bv_a)                         (B*V, K)
#   q_  = ReLU(q @ Wq_a + bq_a)                         (B*Q, K)
#   logits[b, g*Q+j, i] = sum_k h_mat[g,k]*q_[b,j,k]*v_[b,i,k]   (one batched dot)
#   p[g] = softmax over flattened Q*V (zero image rows masked with -inf)
#   v_all = ReLU(v @ concat_g Wv_b[g] + b)              (B*V, G*hid), one MXU call
#   for g: q_g   = ReLU(q_emb @ Wq_b[g] + b)            (B*Q, hid)
#          b_emb = sum_q q_g * (p[g] @ v_g)             (B, hid)
#          q_emb += b_emb @ Wp[g] + bp[g]               (broadcast over Q)
#   out = q_emb.sum(axis=Q)                             (B, hid)
# --------------------------------------------------------------------------
def _ban_fusion_kernel(hbias_ref, mask_ref, v_ref, q_ref,
                       wva_ref, bva_ref, wqa_ref, bqa_ref, hmat_ref,
                       wvb_ref, bvb_ref, wqb_ref, bqb_ref, wpb_ref, bpb_ref,
                       out_ref, *, batch, glimpse):
    f32 = jnp.float32
    bf16 = jnp.bfloat16
    B, G = batch, glimpse

    v2 = v_ref[...]                                   # (B*V, x_dim) f32
    q2 = q_ref[...]                                   # (B*Q, hid)   f32
    n_v = v2.shape[0] // B
    n_q = q2.shape[0] // B
    hid = q2.shape[1]
    v2b = v2.astype(bf16)
    q2b = q2.astype(bf16)

    # ---------------- BiAttention (batch-folded projections) ----------------
    v_a = jnp.maximum(
        jnp.dot(v2b, wva_ref[...], preferred_element_type=f32) + bva_ref[...], 0.0)   # (B*V, K)
    q_a = jnp.maximum(
        jnp.dot(q2b, wqa_ref[...], preferred_element_type=f32) + bqa_ref[...], 0.0)   # (B*Q, K)
    k_dim = v_a.shape[1]

    # qh built directly in bf16: no f32 (G*Q, K) intermediate, single cast pass.
    # (On v5e — no native bf16 VPU — this multiply is emulated; still correct.)
    qh = (hmat_ref[...].reshape(1, G, 1, k_dim)
          * q_a.astype(bf16).reshape(B, 1, n_q, k_dim)).reshape(B, G * n_q, k_dim)

    # Transposed logits (B, G*Q, V): one batched MXU contraction for all glimpses;
    # per-glimpse slices below are cheap sublane (row) slices.
    logits = jnp.einsum('bqk,bvk->bqv', qh,
                        v_a.astype(bf16).reshape(B, n_v, k_dim),
                        preferred_element_type=f32)                                    # (B, G*Q, V)
    mask = mask_ref[...]                                                               # (B, 1, V) additive 0/-inf

    # ---------------- BanBiResNet ----------------
    # Glimpse-invariant image projections in ONE MXU call.
    v_all = jnp.maximum(
        jnp.dot(v2b, wvb_ref[...], preferred_element_type=f32) + bvb_ref[...], 0.0)    # (B*V, G*hid)
    v_all = v_all.reshape(B, n_v, G * hid)

    q_emb = q2.reshape(B, n_q, hid)                   # (B, Q, hid) carry (f32)

    # TODO(synk): at production sizes (hid ~1024, glimpse up to 8) stream the
    #   per-glimpse weights (wqb/wpb and a (VD, hid) slice of wvb) via an inner
    #   "arbitrary" grid axis over glimpse with q_emb/logits/v_a in VMEM scratch,
    #   mark the invariant weight BlockSpecs pipeline_mode=pl.Buffered(1), and set
    #   pltpu.CompilerParams(vmem_limit_bytes=...) — required on v7x (64 MiB
    #   VMEM/TC) and within v5e's 16 MiB scoped default.  At these test sizes
    #   everything fits and the static unroll is cheapest.
    for g in range(G):                                # glimpse small -> static unroll
        # Per-glimpse softmax over the flattened Q*V set; p stays on-chip.
        logit_g = logits[:, g * n_q:(g + 1) * n_q, :] + hbias_ref[g] + mask            # (B, Q, V)
        m = jnp.max(jnp.max(logit_g, axis=2, keepdims=True), axis=1, keepdims=True)    # (B, 1, 1)
        e = jnp.exp(logit_g - m)
        denom = jnp.sum(jnp.sum(e, axis=2, keepdims=True), axis=1, keepdims=True)      # (B, 1, 1)
        p_g = e * pl.reciprocal(denom, approx=True)                                    # (B, Q, V)

        v_g = v_all[:, :, g * hid:(g + 1) * hid]                                       # (B, V, hid)
        q_g = jnp.maximum(
            jnp.dot(q_emb.reshape(B * n_q, hid).astype(bf16), wqb_ref[g],
                    preferred_element_type=f32) + bqb_ref[g], 0.0).reshape(B, n_q, hid)
        # sum_{q,v} p[q,v] v_g[v,h] q_g[q,h]  ==  sum_q q_g[q,h] * (p @ v_g)[q,h]
        wv = jnp.einsum('bqv,bvh->bqh', p_g.astype(bf16), v_g.astype(bf16),
                        preferred_element_type=f32)                                    # (B, Q, hid)
        b_emb = jnp.sum(q_g * wv, axis=1)                                              # (B, hid)
        q_proj = (jnp.dot(b_emb.astype(bf16), wpb_ref[g], preferred_element_type=f32)
                  + bpb_ref[g])                                                        # (B, hid)
        q_emb = q_emb + q_proj.reshape(B, 1, hid)                                      # broadcast over Q

    out_ref[...] = jnp.sum(q_emb, axis=1)                                              # (B, hid)


def ban_multi_model_fusion(img_res, qus_res, attn_params, ban_params, glimpse,
                           *, weight_dtype=jnp.bfloat16):
    """BanMultiModelFusion.forward as one fused pallas_call (batch folded, no grid)."""
    Wv, bv, Wq, bq, hmat, hbias = attn_params
    Wvs, bvs, Wqs, bqs, Wps, bps = ban_params

    B, V, XD = img_res.shape
    _, Q, HID = qus_res.shape
    K = Wv.shape[1]
    VD = Wvs.shape[1]
    G = glimpse
    f32 = jnp.float32

    # Batch-folded activation views (layout no-ops done in the wrapper).
    v2 = img_res.reshape(B * V, XD).astype(f32)
    q2 = qus_res.reshape(B * Q, HID).astype(f32)

    # Additive image-row mask (0 valid, -inf for all-zero rows), oriented with V
    # on the lane axis so the kernel needs no in-kernel transpose.  Trivial cost.
    row_zero = jnp.sum(jnp.abs(img_res), axis=-1) == 0.0                    # (B, V)
    mask = jnp.where(row_zero, -jnp.inf, 0.0).astype(f32)[:, None, :]       # (B, 1, V)
    # TODO(synk): if an ENTIRE image tensor is zero the softmax yields NaN (same as
    #   the PyTorch module); add an explicit guard before production use.

    # Wrapper-side weight packing (done once):
    #   * matmul weights -> bf16 (half the weight DMA/VMEM; f32 accum in-kernel)
    #   * per-glimpse b_net image weights concatenated -> one (VD, G*HID) matmul
    #   * h_bias flattened to 1-D for SMEM scalar reads
    wva = Wv.astype(weight_dtype)
    bva = bv.reshape(1, K).astype(f32)
    wqa = Wq.astype(weight_dtype)
    bqa = bq.reshape(1, K).astype(f32)
    hm = hmat.astype(weight_dtype)
    hb = hbias.reshape(G).astype(f32)
    wvb = jnp.transpose(Wvs, (1, 0, 2)).reshape(VD, G * HID).astype(weight_dtype)
    bvb = bvs.reshape(1, G * HID).astype(f32)
    wqb = Wqs.astype(weight_dtype)
    bqb = bqs.reshape(G, 1, HID).astype(f32)
    wpb = Wps.astype(weight_dtype)
    bpb = bps.reshape(G, 1, HID).astype(f32)

    kernel = functools.partial(_ban_fusion_kernel, batch=B, glimpse=G)

    smem_spec = pl.BlockSpec(memory_space=pltpu.MemorySpace.SMEM)
    vmem_specs = [pl.BlockSpec(memory_space=pltpu.MemorySpace.VMEM) for _ in range(14)]

    return pl.pallas_call(
        kernel,
        out_shape=jax.ShapeDtypeStruct((B, HID), f32),
        in_specs=[smem_spec] + vmem_specs,
        out_specs=pl.BlockSpec(memory_space=pltpu.MemorySpace.VMEM),
    )(hb, mask, v2, q2, wva, bva, wqa, bqa, hm,
      wvb, bvb, wqb, bqb, wpb, bpb)


# --------------------------------------------------------------------------
# Pure-JAX reference (f32 math; for correctness check)
# --------------------------------------------------------------------------
def ref_forward(v, q, attn_params, ban_params, glimpse):
    Wv, bv, Wq, bq, hmat, hbias = attn_params
    B, V, _ = v.shape
    _, Q, _ = q.shape
    v_ = jax.nn.relu(v @ Wv + bv)
    q_ = jax.nn.relu(q @ Wq + bq)
    logits = jnp.einsum('gk,bvk,bqk->bgvq', hmat, v_, q_) + hbias.reshape(1, glimpse, 1, 1)
    row_zero = (jnp.sum(jnp.abs(v), axis=-1) == 0.0)
    logits = jnp.where(row_zero[:, None, :, None], -jnp.inf, logits)
    p = jax.nn.softmax(logits.reshape(B, glimpse, V * Q), axis=2).reshape(B, glimpse, V, Q)

    Wvs, bvs, Wqs, bqs, Wps, bps = ban_params
    q_emb = q
    for g in range(glimpse):
        vg = jax.nn.relu(v @ Wvs[g] + bvs[g])
        qg = jax.nn.relu(q_emb @ Wqs[g] + bqs[g])
        b_emb = jnp.einsum('bvk,bvq,bqk->bk', vg, p[:, g], qg)
        q_proj = b_emb @ Wps[g] + bps[g]
        q_emb = q_emb + q_proj[:, None, :]
    return q_emb.sum(axis=1)


# --------------------------------------------------------------------------
if __name__ == "__main__":
    # Small shapes consistent with the module (x_dim == v_dim, y_dim == hid_dim).
    B, V, Q = 2, 8, 8
    X_DIM, Y_DIM, Z_DIM = 32, 64, 64
    GLIMPSE, V_DIM, HID = 4, 32, 64
    K = Z_DIM * 3   # BCNet k=3 inside BiAttention

    key = jax.random.PRNGKey(0)
    ks = jax.random.split(key, 16)

    img_res = jax.random.normal(ks[0], (B, V, X_DIM), jnp.float32)
    qus_res = jax.random.normal(ks[1], (B, Q, Y_DIM), jnp.float32)

    s = 0.1

    def wgt(k, shape):
        # "Model weights" rounded to bf16 once; the same values feed both the
        # kernel (bf16 MXU operands, f32 accumulation) and the f32 reference.
        w = jax.random.normal(k, shape, jnp.float32) * s
        return w.astype(jnp.bfloat16).astype(jnp.float32)

    def bias(k, shape):
        return jax.random.normal(k, shape, jnp.float32) * s

    # BiAttention (BCNet with k=3, h_out=glimpse): v_net, q_net, h_mat, h_bias
    attn_params = (
        wgt(ks[2], (X_DIM, K)),        # Wv
        bias(ks[3], (1, K)),           # bv
        wgt(ks[4], (Y_DIM, K)),        # Wq
        bias(ks[5], (1, K)),           # bq
        wgt(ks[6], (GLIMPSE, K)),      # h_mat
        bias(ks[7], (GLIMPSE, 1)),     # h_bias
    )
    # BanBiResNet: per-glimpse b_net (BCNet k=1, h_out=None) + q_prj (Linear, no act)
    ban_params = (
        wgt(ks[8],  (GLIMPSE, V_DIM, HID)),   # b_net v_net W
        bias(ks[9],  (GLIMPSE, HID)),         # b_net v_net b
        wgt(ks[10], (GLIMPSE, HID, HID)),     # b_net q_net W
        bias(ks[11], (GLIMPSE, HID)),         # b_net q_net b
        wgt(ks[12], (GLIMPSE, HID, HID)),     # q_prj W
        bias(ks[13], (GLIMPSE, HID)),         # q_prj b
    )
    # TODO(synk): dropout layers (FCNet / BCNet attention dropout) are identity here (eval mode).

    out = ban_multi_model_fusion(img_res, qus_res, attn_params, ban_params, GLIMPSE)
    out = jax.block_until_ready(out)

    ref = ref_forward(img_res, qus_res, attn_params, ban_params, GLIMPSE)
    assert out.shape == (B, HID)
    max_err = float(jnp.max(jnp.abs(out - ref)))
    # Tolerance covers bf16 activation rounding inside the kernel (weights are
    # identical bf16 values in kernel and reference) + approx reciprocal.
    assert jnp.allclose(out, ref, rtol=3e-2, atol=3e-2), (
        f"mismatch vs reference (max abs err {max_err})")

    print("KERNEL_OK")
</pallas_src>

<mosaic_0001>
module attributes {stable_mosaic.version = 11 : i64} {
  func.func @_ban_fusion_kernel(%arg0: memref<4xf32, #tpu.memory_space<smem>>, %arg1: memref<2x1x8xf32, #tpu.memory_space<vmem>>, %arg2: memref<16x32xf32, #tpu.memory_space<vmem>>, %arg3: memref<16x64xf32, #tpu.memory_space<vmem>>, %arg4: memref<32x192xbf16, #tpu.memory_space<vmem>>, %arg5: memref<1x192xf32, #tpu.memory_space<vmem>>, %arg6: memref<64x192xbf16, #tpu.memory_space<vmem>>, %arg7: memref<1x192xf32, #tpu.memory_space<vmem>>, %arg8: memref<4x192xbf16, #tpu.memory_space<vmem>>, %arg9: memref<32x256xbf16, #tpu.memory_space<vmem>>, %arg10: memref<1x256xf32, #tpu.memory_space<vmem>>, %arg11: memref<4x64x64xbf16, #tpu.memory_space<vmem>>, %arg12: memref<4x1x64xf32, #tpu.memory_space<vmem>>, %arg13: memref<4x64x64xbf16, #tpu.memory_space<vmem>>, %arg14: memref<4x1x64xf32, #tpu.memory_space<vmem>>, %arg15: memref<2x64xf32, #tpu.memory_space<vmem>>) attributes {dimension_semantics = [], scalar_prefetch = 0 : i64, scratch_operands = 0 : i64, tpu.core_type = #tpu.core_type<tc>} {
    %c0 = arith.constant 0 : index
    %c0_0 = arith.constant 0 : index
    %0 = vector.load %arg2[%c0, %c0_0] : memref<16x32xf32, #tpu.memory_space<vmem>>, vector<16x32xf32>
    %c0_1 = arith.constant 0 : index
    %c0_2 = arith.constant 0 : index
    %1 = vector.load %arg3[%c0_1, %c0_2] : memref<16x64xf32, #tpu.memory_space<vmem>>, vector<16x64xf32>
    %2 = arith.truncf %0 : vector<16x32xf32> to vector<16x32xbf16>
    %3 = arith.truncf %1 : vector<16x64xf32> to vector<16x64xbf16>
    %c0_3 = arith.constant 0 : index
    %c0_4 = arith.constant 0 : index
    %4 = vector.load %arg4[%c0_3, %c0_4] : memref<32x192xbf16, #tpu.memory_space<vmem>>, vector<32x192xbf16>
    %cst = arith.constant dense<0.000000e+00> : vector<16x192xf32>
    %5 = tpu.matmul %2, %4, %cst {dimension_numbers = #tpu.dot_dimension_numbers<[1], [0], [0], [1], [0, 0, 1, 1], [], []>} : vector<16x32xbf16>, vector<32x192xbf16>, vector<16x192xf32> -> vector<16x192xf32>
    %c0_5 = arith.constant 0 : index
    %c0_6 = arith.constant 0 : index
    %6 = vector.load %arg5[%c0_5, %c0_6] : memref<1x192xf32, #tpu.memory_space<vmem>>, vector<1x192xf32>
    %7 = vector.broadcast %6 : vector<1x192xf32> to vector<16x192xf32>
    %8 = arith.addf %5, %7 : vector<16x192xf32>
    %cst_7 = arith.constant 0.000000e+00 : f32
    %9 = vector.broadcast %cst_7 : f32 to vector<16x192xf32>
    %10 = arith.maximumf %8, %9 : vector<16x192xf32>
    %c0_8 = arith.constant 0 : index
    %c0_9 = arith.constant 0 : index
    %11 = vector.load %arg6[%c0_8, %c0_9] : memref<64x192xbf16, #tpu.memory_space<vmem>>, vector<64x192xbf16>
    %cst_10 = arith.constant dense<0.000000e+00> : vector<16x192xf32>
    %12 = tpu.matmul %3, %11, %cst_10 {dimension_numbers = #tpu.dot_dimension_numbers<[1], [0], [0], [1], [0, 0, 1, 1], [], []>} : vector<16x64xbf16>, vector<64x192xbf16>, vector<16x192xf32> -> vector<16x192xf32>
    %c0_11 = arith.constant 0 : index
    %c0_12 = arith.constant 0 : index
    %13 = vector.load %arg7[%c0_11, %c0_12] : memref<1x192xf32, #tpu.memory_space<vmem>>, vector<1x192xf32>
    %14 = vector.broadcast %13 : vector<1x192xf32> to vector<16x192xf32>
    %15 = arith.addf %12, %14 : vector<16x192xf32>
    %cst_13 = arith.constant 0.000000e+00 : f32
    %16 = vector.broadcast %cst_13 : f32 to vector<16x192xf32>
    %17 = arith.maximumf %15, %16 : vector<16x192xf32>
    %c0_14 = arith.constant 0 : index
    %c0_15 = arith.constant 0 : index
    %18 = vector.load %arg8[%c0_14, %c0_15] : memref<4x192xbf16, #tpu.memory_space<vmem>>, vector<4x192xbf16>
    %19 = vector.shape_cast %18 : vector<4x192xbf16> to vector<1x4x1x192xbf16>
    %20 = arith.truncf %17 : vector<16x192xf32> to vector<16x192xbf16>
    %21 = vector.shape_cast %20 : vector<16x192xbf16> to vector<2x1x8x192xbf16>
    %22 = vector.broadcast %19 : vector<1x4x1x192xbf16> to vector<2x4x8x192xbf16>
    %23 = vector.broadcast %21 : vector<2x1x8x192xbf16> to vector<2x4x8x192xbf16>
    %24 = arith.mulf %22, %23 : vector<2x4x8x192xbf16>
    %25 = vector.shape_cast %24 : vector<2x4x8x192xbf16> to vector<2x32x192xbf16>
    %26 = arith.truncf %10 : vector<16x192xf32> to vector<16x192xbf16>
    %27 = vector.shape_cast %26 : vector<16x192xbf16> to vector<2x8x192xbf16>
    "tpu.trace_start"() <{level = 10 : i32, message = "bqk,bvk->bqv"}> : () -> ()
    %cst_16 = arith.constant dense<0.000000e+00> : vector<2x32x8xf32>
    %28 = tpu.matmul %25, %27, %cst_16 {dimension_numbers = #tpu.dot_dimension_numbers<[2], [2], [1], [1], [0, 0, 0, 1, 1, 1], [0], [0]>} : vector<2x32x192xbf16>, vector<2x8x192xbf16>, vector<2x32x8xf32> -> vector<2x32x8xf32>
    "tpu.trace_stop"() : () -> ()
    %c0_17 = arith.constant 0 : index
    %c0_18 = arith.constant 0 : index
    %c0_19 = arith.constant 0 : index
    %29 = vector.load %arg1[%c0_17, %c0_18, %c0_19] : memref<2x1x8xf32, #tpu.memory_space<vmem>>, vector<2x1x8xf32>
    %c0_20 = arith.constant 0 : index
    %c0_21 = arith.constant 0 : index
    %30 = vector.load %arg9[%c0_20, %c0_21] : memref<32x256xbf16, #tpu.memory_space<vmem>>, vector<32x256xbf16>
    %cst_22 = arith.constant dense<0.000000e+00> : vector<16x256xf32>
    %31 = tpu.matmul %2, %30, %cst_22 {dimension_numbers = #tpu.dot_dimension_numbers<[1], [0], [0], [1], [0, 0, 1, 1], [], []>} : vector<16x32xbf16>, vector<32x256xbf16>, vector<16x256xf32> -> vector<16x256xf32>
    %c0_23 = arith.constant 0 : index
    %c0_24 = arith.constant 0 : index
    %32 = vector.load %arg10[%c0_23, %c0_24] : memref<1x256xf32, #tpu.memory_space<vmem>>, vector<1x256xf32>
    %33 = vector.broadcast %32 : vector<1x256xf32> to vector<16x256xf32>
    %34 = arith.addf %31, %33 : vector<16x256xf32>
    %cst_25 = arith.constant 0.000000e+00 : f32
    %35 = vector.broadcast %cst_25 : f32 to vector<16x256xf32>
    %36 = arith.maximumf %34, %35 : vector<16x256xf32>
    %37 = vector.shape_cast %36 : vector<16x256xf32> to vector<2x8x256xf32>
    %38 = vector.shape_cast %1 : vector<16x64xf32> to vector<2x8x64xf32>
    %39 = vector.extract_strided_slice %28 {offsets = [0, 0, 0], sizes = [2, 8, 8], strides = [1, 1, 1]} : vector<2x32x8xf32> to vector<2x8x8xf32>
    %c0_26 = arith.constant 0 : index
    %40 = memref.load %arg0[%c0_26] : memref<4xf32, #tpu.memory_space<smem>>
    %41 = vector.broadcast %40 : f32 to vector<2x8x8xf32>
    %42 = arith.addf %39, %41 : vector<2x8x8xf32>
    %43 = vector.broadcast %29 : vector<2x1x8xf32> to vector<2x8x8xf32>
    %44 = arith.addf %42, %43 : vector<2x8x8xf32>
    %cst_27 = arith.constant dense<0xFF800000> : vector<2x8xf32>
    %45 = vector.multi_reduction <maximumf>, %44, %cst_27 [2] : vector<2x8x8xf32> to vector<2x8xf32>
    %46 = vector.shape_cast %45 : vector<2x8xf32> to vector<2x8x1xf32>
    %cst_28 = arith.constant dense<0xFF800000> : vector<2x1xf32>
    %47 = vector.multi_reduction <maximumf>, %46, %cst_28 [1] : vector<2x8x1xf32> to vector<2x1xf32>
    %48 = vector.shape_cast %47 : vector<2x1xf32> to vector<2x1x1xf32>
    %49 = vector.broadcast %48 : vector<2x1x1xf32> to vector<2x8x8xf32>
    %50 = arith.subf %44, %49 : vector<2x8x8xf32>
    %51 = math.exp %50 : vector<2x8x8xf32>
    %cst_29 = arith.constant dense<0.000000e+00> : vector<2x8xf32>
    %52 = vector.multi_reduction <add>, %51, %cst_29 [2] : vector<2x8x8xf32> to vector<2x8xf32>
    %53 = vector.shape_cast %52 : vector<2x8xf32> to vector<2x8x1xf32>
    %cst_30 = arith.constant dense<0.000000e+00> : vector<2x1xf32>
    %54 = vector.multi_reduction <add>, %53, %cst_30 [1] : vector<2x8x1xf32> to vector<2x1xf32>
    %55 = vector.shape_cast %54 : vector<2x1xf32> to vector<2x1x1xf32>
    %56 = tpu.reciprocal %55 {approx = true} : vector<2x1x1xf32> -> vector<2x1x1xf32>
    %57 = vector.broadcast %56 : vector<2x1x1xf32> to vector<2x8x8xf32>
    %58 = arith.mulf %51, %57 : vector<2x8x8xf32>
    %59 = vector.extract_strided_slice %37 {offsets = [0, 0, 0], sizes = [2, 8, 64], strides = [1, 1, 1]} : vector<2x8x256xf32> to vector<2x8x64xf32>
    %60 = vector.shape_cast %38 : vector<2x8x64xf32> to vector<16x64xf32>
    %61 = arith.truncf %60 : vector<16x64xf32> to vector<16x64xbf16>
    %c0_31 = arith.constant 0 : index
    %c0_32 = arith.constant 0 : index
    %c0_33 = arith.constant 0 : index
    %62 = vector.load %arg11[%c0_31, %c0_32, %c0_33] : memref<4x64x64xbf16, #tpu.memory_space<vmem>>, vector<1x64x64xbf16>
    %63 = vector.shape_cast %62 : vector<1x64x64xbf16> to vector<64x64xbf16>
    %cst_34 = arith.constant dense<0.000000e+00> : vector<16x64xf32>
    %64 = tpu.matmul %61, %63, %cst_34 {dimension_numbers = #tpu.dot_dimension_numbers<[1], [0], [0], [1], [0, 0, 1, 1], [], []>} : vector<16x64xbf16>, vector<64x64xbf16>, vector<16x64xf32> -> vector<16x64xf32>
    %c0_35 = arith.constant 0 : index
    %c0_36 = arith.constant 0 : index
    %c0_37 = arith.constant 0 : index
    %65 = vector.load %arg12[%c0_35, %c0_36, %c0_37] : memref<4x1x64xf32, #tpu.memory_space<vmem>>, vector<1x1x64xf32>
    %66 = vector.shape_cast %65 : vector<1x1x64xf32> to vector<1x64xf32>
    %67 = vector.broadcast %66 : vector<1x64xf32> to vector<16x64xf32>
    %68 = arith.addf %64, %67 : vector<16x64xf32>
    %cst_38 = arith.constant 0.000000e+00 : f32
    %69 = vector.broadcast %cst_38 : f32 to vector<16x64xf32>
    %70 = arith.maximumf %68, %69 : vector<16x64xf32>
    %71 = vector.shape_cast %70 : vector<16x64xf32> to vector<2x8x64xf32>
    %72 = arith.truncf %58 : vector<2x8x8xf32> to vector<2x8x8xbf16>
    %73 = arith.truncf %59 : vector<2x8x64xf32> to vector<2x8x64xbf16>
    "tpu.trace_start"() <{level = 10 : i32, message = "bqv,bvh->bqh"}> : () -> ()
    %cst_39 = arith.constant dense<0.000000e+00> : vector<2x8x64xf32>
    %74 = tpu.matmul %72, %73, %cst_39 {dimension_numbers = #tpu.dot_dimension_numbers<[2], [1], [1], [2], [0, 0, 0, 1, 1, 2], [0], [0]>} : vector<2x8x8xbf16>, vector<2x8x64xbf16>, vector<2x8x64xf32> -> vector<2x8x64xf32>
    "tpu.trace_stop"() : () -> ()
    %75 = arith.mulf %71, %74 : vector<2x8x64xf32>
    %cst_40 = arith.constant dense<0.000000e+00> : vector<2x64xf32>
    %76 = vector.multi_reduction <add>, %75, %cst_40 [1] : vector<2x8x64xf32> to vector<2x64xf32>
    %77 = arith.truncf %76 : vector<2x64xf32> to vector<2x64xbf16>
    %c0_41 = arith.constant 0 : index
    %c0_42 = arith.constant 0 : index
    %c0_43 = arith.constant 0 : index
    %78 = vector.load %arg13[%c0_41, %c0_42, %c0_43] : memref<4x64x64xbf16, #tpu.memory_space<vmem>>, vector<1x64x64xbf16>
    %79 = vector.shape_cast %78 : vector<1x64x64xbf16> to vector<64x64xbf16>
    %cst_44 = arith.constant dense<0.000000e+00> : vector<2x64xf32>
    %80 = tpu.matmul %77, %79, %cst_44 {dimension_numbers = #tpu.dot_dimension_numbers<[1], [0], [0], [1], [0, 0, 1, 1], [], []>} : vector<2x64xbf16>, vector<64x64xbf16>, vector<2x64xf32> -> vector<2x64xf32>
    %c0_45 = arith.constant 0 : index
    %c0_46 = arith.constant 0 : index
    %c0_47 = arith.constant 0 : index
    %81 = vector.load %arg14[%c0_45, %c0_46, %c0_47] : memref<4x1x64xf32, #tpu.memory_space<vmem>>, vector<1x1x64xf32>
    %82 = vector.shape_cast %81 : vector<1x1x64xf32> to vector<1x64xf32>
    %83 = vector.broadcast %82 : vector<1x64xf32> to vector<2x64xf32>
    %84 = arith.addf %80, %83 : vector<2x64xf32>
    %85 = vector.shape_cast %84 : vector<2x64xf32> to vector<2x1x64xf32>
    %86 = vector.broadcast %85 : vector<2x1x64xf32> to vector<2x8x64xf32>
    %87 = arith.addf %38, %86 : vector<2x8x64xf32>
    %88 = vector.extract_strided_slice %28 {offsets = [0, 8, 0], sizes = [2, 8, 8], strides = [1, 1, 1]} : vector<2x32x8xf32> to vector<2x8x8xf32>
    %c1 = arith.constant 1 : index
    %89 = memref.load %arg0[%c1] : memref<4xf32, #tpu.memory_space<smem>>
    %90 = vector.broadcast %89 : f32 to vector<2x8x8xf32>
    %91 = arith.addf %88, %90 : vector<2x8x8xf32>
    %92 = vector.broadcast %29 : vector<2x1x8xf32> to vector<2x8x8xf32>
    %93 = arith.addf %91, %92 : vector<2x8x8xf32>
    %cst_48 = arith.constant dense<0xFF800000> : vector<2x8xf32>
    %94 = vector.multi_reduction <maximumf>, %93, %cst_48 [2] : vector<2x8x8xf32> to vector<2x8xf32>
    %95 = vector.shape_cast %94 : vector<2x8xf32> to vector<2x8x1xf32>
    %cst_49 = arith.constant dense<0xFF800000> : vector<2x1xf32>
    %96 = vector.multi_reduction <maximumf>, %95, %cst_49 [1] : vector<2x8x1xf32> to vector<2x1xf32>
    %97 = vector.shape_cast %96 : vector<2x1xf32> to vector<2x1x1xf32>
    %98 = vector.broadcast %97 : vector<2x1x1xf32> to vector<2x8x8xf32>
    %99 = arith.subf %93, %98 : vector<2x8x8xf32>
    %100 = math.exp %99 : vector<2x8x8xf32>
    %cst_50 = arith.constant dense<0.000000e+00> : vector<2x8xf32>
    %101 = vector.multi_reduction <add>, %100, %cst_50 [2] : vector<2x8x8xf32> to vector<2x8xf32>
    %102 = vector.shape_cast %101 : vector<2x8xf32> to vector<2x8x1xf32>
    %cst_51 = arith.constant dense<0.000000e+00> : vector<2x1xf32>
    %103 = vector.multi_reduction <add>, %102, %cst_51 [1] : vector<2x8x1xf32> to vector<2x1xf32>
    %104 = vector.shape_cast %103 : vector<2x1xf32> to vector<2x1x1xf32>
    %105 = tpu.reciprocal %104 {approx = true} : vector<2x1x1xf32> -> vector<2x1x1xf32>
    %106 = vector.broadcast %105 : vector<2x1x1xf32> to vector<2x8x8xf32>
    %107 = arith.mulf %100, %106 : vector<2x8x8xf32>
    %108 = vector.extract_strided_slice %37 {offsets = [0, 0, 64], sizes = [2, 8, 64], strides = [1, 1, 1]} : vector<2x8x256xf32> to vector<2x8x64xf32>
    %109 = vector.shape_cast %87 : vector<2x8x64xf32> to vector<16x64xf32>
    %110 = arith.truncf %109 : vector<16x64xf32> to vector<16x64xbf16>
    %c1_52 = arith.constant 1 : index
    %c0_53 = arith.constant 0 : index
    %c0_54 = arith.constant 0 : index
    %111 = vector.load %arg11[%c1_52, %c0_53, %c0_54] : memref<4x64x64xbf16, #tpu.memory_space<vmem>>, vector<1x64x64xbf16>
    %112 = vector.shape_cast %111 : vector<1x64x64xbf16> to vector<64x64xbf16>
    %cst_55 = arith.constant dense<0.000000e+00> : vector<16x64xf32>
    %113 = tpu.matmul %110, %112, %cst_55 {dimension_numbers = #tpu.dot_dimension_numbers<[1], [0], [0], [1], [0, 0, 1, 1], [], []>} : vector<16x64xbf16>, vector<64x64xbf16>, vector<16x64xf32> -> vector<16x64xf32>
    %c1_56 = arith.constant 1 : index
    %c0_57 = arith.constant 0 : index
    %c0_58 = arith.constant 0 : index
    %114 = vector.load %arg12[%c1_56, %c0_57, %c0_58] : memref<4x1x64xf32, #tpu.memory_space<vmem>>, vector<1x1x64xf32>
    %115 = vector.shape_cast %114 : vector<1x1x64xf32> to vector<1x64xf32>
    %116 = vector.broadcast %115 : vector<1x64xf32> to vector<16x64xf32>
    %117 = arith.addf %113, %116 : vector<16x64xf32>
    %cst_59 = arith.constant 0.000000e+00 : f32
    %118 = vector.broadcast %cst_59 : f32 to vector<16x64xf32>
    %119 = arith.maximumf %117, %118 : vector<16x64xf32>
    %120 = vector.shape_cast %119 : vector<16x64xf32> to vector<2x8x64xf32>
    %121 = arith.truncf %107 : vector<2x8x8xf32> to vector<2x8x8xbf16>
    %122 = arith.truncf %108 : vector<2x8x64xf32> to vector<2x8x64xbf16>
    "tpu.trace_start"() <{level = 10 : i32, message = "bqv,bvh->bqh"}> : () -> ()
    %cst_60 = arith.constant dense<0.000000e+00> : vector<2x8x64xf32>
    %123 = tpu.matmul %121, %122, %cst_60 {dimension_numbers = #tpu.dot_dimension_numbers<[2], [1], [1], [2], [0, 0, 0, 1, 1, 2], [0], [0]>} : vector<2x8x8xbf16>, vector<2x8x64xbf16>, vector<2x8x64xf32> -> vector<2x8x64xf32>
    "tpu.trace_stop"() : () -> ()
    %124 = arith.mulf %120, %123 : vector<2x8x64xf32>
    %cst_61 = arith.constant dense<0.000000e+00> : vector<2x64xf32>
    %125 = vector.multi_reduction <add>, %124, %cst_61 [1] : vector<2x8x64xf32> to vector<2x64xf32>
    %126 = arith.truncf %125 : vector<2x64xf32> to vector<2x64xbf16>
    %c1_62 = arith.constant 1 : index
    %c0_63 = arith.constant 0 : index
    %c0_64 = arith.constant 0 : index
    %127 = vector.load %arg13[%c1_62, %c0_63, %c0_64] : memref<4x64x64xbf16, #tpu.memory_space<vmem>>, vector<1x64x64xbf16>
    %128 = vector.shape_cast %127 : vector<1x64x64xbf16> to vector<64x64xbf16>
    %cst_65 = arith.constant dense<0.000000e+00> : vector<2x64xf32>
    %129 = tpu.matmul %126, %128, %cst_65 {dimension_numbers = #tpu.dot_dimension_numbers<[1], [0], [0], [1], [0, 0, 1, 1], [], []>} : vector<2x64xbf16>, vector<64x64xbf16>, vector<2x64xf32> -> vector<2x64xf32>
    %c1_66 = arith.constant 1 : index
    %c0_67 = arith.constant 0 : index
    %c0_68 = arith.constant 0 : index
    %130 = vector.load %arg14[%c1_66, %c0_67, %c0_68] : memref<4x1x64xf32, #tpu.memory_space<vmem>>, vector<1x1x64xf32>
    %131 = vector.shape_cast %130 : vector<1x1x64xf32> to vector<1x64xf32>
    %132 = vector.broadcast %131 : vector<1x64xf32> to vector<2x64xf32>
    %133 = arith.addf %129, %132 : vector<2x64xf32>
    %134 = vector.shape_cast %133 : vector<2x64xf32> to vector<2x1x64xf32>
    %135 = vector.broadcast %134 : vector<2x1x64xf32> to vector<2x8x64xf32>
    %136 = arith.addf %87, %135 : vector<2x8x64xf32>
    %137 = vector.extract_strided_slice %28 {offsets = [0, 16, 0], sizes = [2, 8, 8], strides = [1, 1, 1]} : vector<2x32x8xf32> to vector<2x8x8xf32>
    %c2 = arith.constant 2 : index
    %138 = memref.load %arg0[%c2] : memref<4xf32, #tpu.memory_space<smem>>
    %139 = vector.broadcast %138 : f32 to vector<2x8x8xf32>
    %140 = arith.addf %137, %139 : vector<2x8x8xf32>
    %141 = vector.broadcast %29 : vector<2x1x8xf32> to vector<2x8x8xf32>
    %142 = arith.addf %140, %141 : vector<2x8x8xf32>
    %cst_69 = arith.constant dense<0xFF800000> : vector<2x8xf32>
    %143 = vector.multi_reduction <maximumf>, %142, %cst_69 [2] : vector<2x8x8xf32> to vector<2x8xf32>
    %144 = vector.shape_cast %143 : vector<2x8xf32> to vector<2x8x1xf32>
    %cst_70 = arith.constant dense<0xFF800000> : vector<2x1xf32>
    %145 = vector.multi_reduction <maximumf>, %144, %cst_70 [1] : vector<2x8x1xf32> to vector<2x1xf32>
    %146 = vector.shape_cast %145 : vector<2x1xf32> to vector<2x1x1xf32>
    %147 = vector.broadcast %146 : vector<2x1x1xf32> to vector<2x8x8xf32>
    %148 = arith.subf %142, %147 : vector<2x8x8xf32>
    %149 = math.exp %148 : vector<2x8x8xf32>
    %cst_71 = arith.constant dense<0.000000e+00> : vector<2x8xf32>
    %150 = vector.multi_reduction <add>, %149, %cst_71 [2] : vector<2x8x8xf32> to vector<2x8xf32>
    %151 = vector.shape_cast %150 : vector<2x8xf32> to vector<2x8x1xf32>
    %cst_72 = arith.constant dense<0.000000e+00> : vector<2x1xf32>
    %152 = vector.multi_reduction <add>, %151, %cst_72 [1] : vector<2x8x1xf32> to vector<2x1xf32>
    %153 = vector.shape_cast %152 : vector<2x1xf32> to vector<2x1x1xf32>
    %154 = tpu.reciprocal %153 {approx = true} : vector<2x1x1xf32> -> vector<2x1x1xf32>
    %155 = vector.broadcast %154 : vector<2x1x1xf32> to vector<2x8x8xf32>
    %156 = arith.mulf %149, %155 : vector<2x8x8xf32>
    %157 = vector.extract_strided_slice %37 {offsets = [0, 0, 128], sizes = [2, 8, 64], strides = [1, 1, 1]} : vector<2x8x256xf32> to vector<2x8x64xf32>
    %158 = vector.shape_cast %136 : vector<2x8x64xf32> to vector<16x64xf32>
    %159 = arith.truncf %158 : vector<16x64xf32> to vector<16x64xbf16>
    %c2_73 = arith.constant 2 : index
    %c0_74 = arith.constant 0 : index
    %c0_75 = arith.constant 0 : index
    %160 = vector.load %arg11[%c2_73, %c0_74, %c0_75] : memref<4x64x64xbf16, #tpu.memory_space<vmem>>, vector<1x64x64xbf16>
    %161 = vector.shape_cast %160 : vector<1x64x64xbf16> to vector<64x64xbf16>
    %cst_76 = arith.constant dense<0.000000e+00> : vector<16x64xf32>
    %162 = tpu.matmul %159, %161, %cst_76 {dimension_numbers = #tpu.dot_dimension_numbers<[1], [0], [0], [1], [0, 0, 1, 1], [], []>} : vector<16x64xbf16>, vector<64x64xbf16>, vector<16x64xf32> -> vector<16x64xf32>
    %c2_77 = arith.constant 2 : index
    %c0_78 = arith.constant 0 : index
    %c0_79 = arith.constant 0 : index
    %163 = vector.load %arg12[%c2_77, %c0_78, %c0_79] : memref<4x1x64xf32, #tpu.memory_space<vmem>>, vector<1x1x64xf32>
    %164 = vector.shape_cast %163 : vector<1x1x64xf32> to vector<1x64xf32>
    %165 = vector.broadcast %164 : vector<1x64xf32> to vector<16x64xf32>
    %166 = arith.addf %162, %165 : vector<16x64xf32>
    %cst_80 = arith.constant 0.000000e+00 : f32
    %167 = vector.broadcast %cst_80 : f32 to vector<16x64xf32>
    %168 = arith.maximumf %166, %167 : vector<16x64xf32>
    %169 = vector.shape_cast %168 : vector<16x64xf32> to vector<2x8x64xf32>
    %170 = arith.truncf %156 : vector<2x8x8xf32> to vector<2x8x8xbf16>
    %171 = arith.truncf %157 : vector<2x8x64xf32> to vector<2x8x64xbf16>
    "tpu.trace_start"() <{level = 10 : i32, message = "bqv,bvh->bqh"}> : () -> ()
    %cst_81 = arith.constant dense<0.000000e+00> : vector<2x8x64xf32>
    %172 = tpu.matmul %170, %171, %cst_81 {dimension_numbers = #tpu.dot_dimension_numbers<[2], [1], [1], [2], [0, 0, 0, 1, 1, 2], [0], [0]>} : vector<2x8x8xbf16>, vector<2x8x64xbf16>, vector<2x8x64xf32> -> vector<2x8x64xf32>
    "tpu.trace_stop"() : () -> ()
    %173 = arith.mulf %169, %172 : vector<2x8x64xf32>
    %cst_82 = arith.constant dense<0.000000e+00> : vector<2x64xf32>
    %174 = vector.multi_reduction <add>, %173, %cst_82 [1] : vector<2x8x64xf32> to vector<2x64xf32>
    %175 = arith.truncf %174 : vector<2x64xf32> to vector<2x64xbf16>
    %c2_83 = arith.constant 2 : index
    %c0_84 = arith.constant 0 : index
    %c0_85 = arith.constant 0 : index
    %176 = vector.load %arg13[%c2_83, %c0_84, %c0_85] : memref<4x64x64xbf16, #tpu.memory_space<vmem>>, vector<1x64x64xbf16>
    %177 = vector.shape_cast %176 : vector<1x64x64xbf16> to vector<64x64xbf16>
    %cst_86 = arith.constant dense<0.000000e+00> : vector<2x64xf32>
    %178 = tpu.matmul %175, %177, %cst_86 {dimension_numbers = #tpu.dot_dimension_numbers<[1], [0], [0], [1], [0, 0, 1, 1], [], []>} : vector<2x64xbf16>, vector<64x64xbf16>, vector<2x64xf32> -> vector<2x64xf32>
    %c2_87 = arith.constant 2 : index
    %c0_88 = arith.constant 0 : index
    %c0_89 = arith.constant 0 : index
    %179 = vector.load %arg14[%c2_87, %c0_88, %c0_89] : memref<4x1x64xf32, #tpu.memory_space<vmem>>, vector<1x1x64xf32>
    %180 = vector.shape_cast %179 : vector<1x1x64xf32> to vector<1x64xf32>
    %181 = vector.broadcast %180 : vector<1x64xf32> to vector<2x64xf32>
    %182 = arith.addf %178, %181 : vector<2x64xf32>
    %183 = vector.shape_cast %182 : vector<2x64xf32> to vector<2x1x64xf32>
    %184 = vector.broadcast %183 : vector<2x1x64xf32> to vector<2x8x64xf32>
    %185 = arith.addf %136, %184 : vector<2x8x64xf32>
    %186 = vector.extract_strided_slice %28 {offsets = [0, 24, 0], sizes = [2, 8, 8], strides = [1, 1, 1]} : vector<2x32x8xf32> to vector<2x8x8xf32>
    %c3 = arith.constant 3 : index
    %187 = memref.load %arg0[%c3] : memref<4xf32, #tpu.memory_space<smem>>
    %188 = vector.broadcast %187 : f32 to vector<2x8x8xf32>
    %189 = arith.addf %186, %188 : vector<2x8x8xf32>
    %190 = vector.broadcast %29 : vector<2x1x8xf32> to vector<2x8x8xf32>
    %191 = arith.addf %189, %190 : vector<2x8x8xf32>
    %cst_90 = arith.constant dense<0xFF800000> : vector<2x8xf32>
    %192 = vector.multi_reduction <maximumf>, %191, %cst_90 [2] : vector<2x8x8xf32> to vector<2x8xf32>
    %193 = vector.shape_cast %192 : vector<2x8xf32> to vector<2x8x1xf32>
    %cst_91 = arith.constant dense<0xFF800000> : vector<2x1xf32>
    %194 = vector.multi_reduction <maximumf>, %193, %cst_91 [1] : vector<2x8x1xf32> to vector<2x1xf32>
    %195 = vector.shape_cast %194 : vector<2x1xf32> to vector<2x1x1xf32>
    %196 = vector.broadcast %195 : vector<2x1x1xf32> to vector<2x8x8xf32>
    %197 = arith.subf %191, %196 : vector<2x8x8xf32>
    %198 = math.exp %197 : vector<2x8x8xf32>
    %cst_92 = arith.constant dense<0.000000e+00> : vector<2x8xf32>
    %199 = vector.multi_reduction <add>, %198, %cst_92 [2] : vector<2x8x8xf32> to vector<2x8xf32>
    %200 = vector.shape_cast %199 : vector<2x8xf32> to vector<2x8x1xf32>
    %cst_93 = arith.constant dense<0.000000e+00> : vector<2x1xf32>
    %201 = vector.multi_reduction <add>, %200, %cst_93 [1] : vector<2x8x1xf32> to vector<2x1xf32>
    %202 = vector.shape_cast %201 : vector<2x1xf32> to vector<2x1x1xf32>
    %203 = tpu.reciprocal %202 {approx = true} : vector<2x1x1xf32> -> vector<2x1x1xf32>
    %204 = vector.broadcast %203 : vector<2x1x1xf32> to vector<2x8x8xf32>
    %205 = arith.mulf %198, %204 : vector<2x8x8xf32>
    %206 = vector.extract_strided_slice %37 {offsets = [0, 0, 192], sizes = [2, 8, 64], strides = [1, 1, 1]} : vector<2x8x256xf32> to vector<2x8x64xf32>
    %207 = vector.shape_cast %185 : vector<2x8x64xf32> to vector<16x64xf32>
    %208 = arith.truncf %207 : vector<16x64xf32> to vector<16x64xbf16>
    %c3_94 = arith.constant 3 : index
    %c0_95 = arith.constant 0 : index
    %c0_96 = arith.constant 0 : index
    %209 = vector.load %arg11[%c3_94, %c0_95, %c0_96] : memref<4x64x64xbf16, #tpu.memory_space<vmem>>, vector<1x64x64xbf16>
    %210 = vector.shape_cast %209 : vector<1x64x64xbf16> to vector<64x64xbf16>
    %cst_97 = arith.constant dense<0.000000e+00> : vector<16x64xf32>
    %211 = tpu.matmul %208, %210, %cst_97 {dimension_numbers = #tpu.dot_dimension_numbers<[1], [0], [0], [1], [0, 0, 1, 1], [], []>} : vector<16x64xbf16>, vector<64x64xbf16>, vector<16x64xf32> -> vector<16x64xf32>
    %c3_98 = arith.constant 3 : index
    %c0_99 = arith.constant 0 : index
    %c0_100 = arith.constant 0 : index
    %212 = vector.load %arg12[%c3_98, %c0_99, %c0_100] : memref<4x1x64xf32, #tpu.memory_space<vmem>>, vector<1x1x64xf32>
    %213 = vector.shape_cast %212 : vector<1x1x64xf32> to vector<1x64xf32>
    %214 = vector.broadcast %213 : vector<1x64xf32> to vector<16x64xf32>
    %215 = arith.addf %211, %214 : vector<16x64xf32>
    %cst_101 = arith.constant 0.000000e+00 : f32
    %216 = vector.broadcast %cst_101 : f32 to vector<16x64xf32>
    %217 = arith.maximumf %215, %216 : vector<16x64xf32>
    %218 = vector.shape_cast %217 : vector<16x64xf32> to vector<2x8x64xf32>
    %219 = arith.truncf %205 : vector<2x8x8xf32> to vector<2x8x8xbf16>
    %220 = arith.truncf %206 : vector<2x8x64xf32> to vector<2x8x64xbf16>
    "tpu.trace_start"() <{level = 10 : i32, message = "bqv,bvh->bqh"}> : () -> ()
    %cst_102 = arith.constant dense<0.000000e+00> : vector<2x8x64xf32>
    %221 = tpu.matmul %219, %220, %cst_102 {dimension_numbers = #tpu.dot_dimension_numbers<[2], [1], [1], [2], [0, 0, 0, 1, 1, 2], [0], [0]>} : vector<2x8x8xbf16>, vector<2x8x64xbf16>, vector<2x8x64xf32> -> vector<2x8x64xf32>
    "tpu.trace_stop"() : () -> ()
    %222 = arith.mulf %218, %221 : vector<2x8x64xf32>
    %cst_103 = arith.constant dense<0.000000e+00> : vector<2x64xf32>
    %223 = vector.multi_reduction <add>, %222, %cst_103 [1] : vector<2x8x64xf32> to vector<2x64xf32>
    %224 = arith.truncf %223 : vector<2x64xf32> to vector<2x64xbf16>
    %c3_104 = arith.constant 3 : index
    %c0_105 = arith.constant 0 : index
    %c0_106 = arith.constant 0 : index
    %225 = vector.load %arg13[%c3_104, %c0_105, %c0_106] : memref<4x64x64xbf16, #tpu.memory_space<vmem>>, vector<1x64x64xbf16>
    %226 = vector.shape_cast %225 : vector<1x64x64xbf16> to vector<64x64xbf16>
    %cst_107 = arith.constant dense<0.000000e+00> : vector<2x64xf32>
    %227 = tpu.matmul %224, %226, %cst_107 {dimension_numbers = #tpu.dot_dimension_numbers<[1], [0], [0], [1], [0, 0, 1, 1], [], []>} : vector<2x64xbf16>, vector<64x64xbf16>, vector<2x64xf32> -> vector<2x64xf32>
    %c3_108 = arith.constant 3 : index
    %c0_109 = arith.constant 0 : index
    %c0_110 = arith.constant 0 : index
    %228 = vector.load %arg14[%c3_108, %c0_109, %c0_110] : memref<4x1x64xf32, #tpu.memory_space<vmem>>, vector<1x1x64xf32>
    %229 = vector.shape_cast %228 : vector<1x1x64xf32> to vector<1x64xf32>
    %230 = vector.broadcast %229 : vector<1x64xf32> to vector<2x64xf32>
    %231 = arith.addf %227, %230 : vector<2x64xf32>
    %232 = vector.shape_cast %231 : vector<2x64xf32> to vector<2x1x64xf32>
    %233 = vector.broadcast %232 : vector<2x1x64xf32> to vector<2x8x64xf32>
    %234 = arith.addf %185, %233 : vector<2x8x64xf32>
    %cst_111 = arith.constant dense<0.000000e+00> : vector<2x64xf32>
    %235 = vector.multi_reduction <add>, %234, %cst_111 [1] : vector<2x8x64xf32> to vector<2x64xf32>
    %c0_112 = arith.constant 0 : index
    %c0_113 = arith.constant 0 : index
    %236 = vector.load %arg15[%c0_112, %c0_113] : memref<2x64xf32, #tpu.memory_space<vmem>>, vector<2x64xf32>
    tpu.vector_store %arg15[%c0_112, %c0_113], %235 {strides = array<i32>} : memref<2x64xf32, #tpu.memory_space<vmem>>, vector<2x64xf32>,
    return
  }
}

</mosaic_0001>

<llo_original>
// kernel: tpu_custom_call.1
$region0: #{tpu_custom_call.1}
  #allocation0 [shape = 'u32[]', space=smem, size = 0x4, offset = 0x4, fixed_abs, tag = 'smem constant byte address 0x4 - core index']
  #allocation1 [shape = 'u32[72,128]{1,0:T(1,128)}', space=vmem, size = 0x9000, scoped, tag = 'internal scratch']
  %s0 = inlined_call_operand.hbm [shape: f32[4], index: 0, kind: input, shape index: {}]
  %s1 = inlined_call_operand.hbm [shape: f32[2,1,8], index: 1, kind: input, shape index: {}]
  %s2 = inlined_call_operand.hbm [shape: f32[16,32], index: 2, kind: input, shape index: {}]
  %s3 = inlined_call_operand.hbm [shape: f32[16,64], index: 3, kind: input, shape index: {}]
  %s4 = inlined_call_operand.hbm [shape: bf16[32,192], index: 4, kind: input, shape index: {}]
  %s5 = inlined_call_operand.hbm [shape: f32[1,192], index: 5, kind: input, shape index: {}]
  %s6 = inlined_call_operand.hbm [shape: bf16[64,192], index: 6, kind: input, shape index: {}]
  %s7 = inlined_call_operand.hbm [shape: f32[1,192], index: 7, kind: input, shape index: {}]
  %s8 = inlined_call_operand.vmem [shape: bf16[4,192], index: 8, kind: input, shape index: {}]
  %s9 = inlined_call_operand.hbm [shape: bf16[32,256], index: 9, kind: input, shape index: {}]
  %s10 = inlined_call_operand.hbm [shape: f32[1,256], index: 10, kind: input, shape index: {}]
  %s11 = inlined_call_operand.hbm [shape: bf16[4,64,64], index: 11, kind: input, shape index: {}]
  %s12 = inlined_call_operand.vmem [shape: f32[4,1,64], index: 12, kind: input, shape index: {}]
  %s13 = inlined_call_operand.hbm [shape: bf16[4,64,64], index: 13, kind: input, shape index: {}]
  %s14 = inlined_call_operand.vmem [shape: f32[4,1,64], index: 14, kind: input, shape index: {}]
  %s15 = inlined_call_operand.hbm [shape: f32[2,64], index: 15, kind: output, shape index: {}]
  %s16 = sld [smem:[#allocation0]]
  $region118: #{tpu_custom_call.1} parent=0
    _
  %s18 = ssub.s32 1, %s16
  %s19 = scalar_select 0, %s18, %s16
  $region1: #{tpu_custom_call.1} parent=0
    #allocation2 [shape = 'u8[512]{0}', space=smem, size = 0x200, scoped, tag = 'input window, operand 0, single buffered']
    #allocation3 [shape = 's32[1]{0}', space=sflag, size = 0x4, scoped, tag = 'scoped memory for tpu_custom_call.1']
    #allocation4 [shape = 's32[1]{0}', space=sflag, size = 0x4, scoped, tag = 'scoped memory for tpu_custom_call.1']
    #allocation5 [shape = 's32[1]{0}', space=sflag, size = 0x4, scoped, tag = 'scoped memory for tpu_custom_call.1']
    #allocation6 [shape = 'u8[1024]{0}', space=vmem, size = 0x400, scoped, tag = 'input window, operand 1, single buffered']
    #allocation7 [shape = 'u8[8192]{0}', space=vmem, size = 0x2000, scoped, tag = 'input window, operand 2, single buffered']
    #allocation8 [shape = 's32[1]{0}', space=sflag, size = 0x4, scoped, tag = 'scoped memory for tpu_custom_call.1']
    #allocation9 [shape = 'u8[8192]{0}', space=vmem, size = 0x2000, scoped, tag = 'input window, operand 3, single buffered']
    #allocation10 [shape = 'u8[16384]{0}', space=vmem, size = 0x4000, scoped, tag = 'input window, operand 4, single buffered']
    #allocation11 [shape = 's32[1]{0}', space=sflag, size = 0x4, scoped, tag = 'scoped memory for tpu_custom_call.1']
    #allocation12 [shape = 'u8[1024]{0}', space=vmem, size = 0x400, scoped, tag = 'input window, operand 5, single buffered']
    #allocation13 [shape = 'u8[32768]{0}', space=vmem, size = 0x8000, scoped, tag = 'input window, operand 6, single buffered']
    #allocation14 [shape = 's32[1]{0}', space=sflag, size = 0x4, scoped, tag = 'scoped memory for tpu_custom_call.1']
    #allocation15 [shape = 'u8[1024]{0}', space=vmem, size = 0x400, scoped, tag = 'input window, operand 7, single buffered']
    #allocation16 [shape = 'u8[16384]{0}', space=vmem, size = 0x4000, scoped, tag = 'input window, operand 9, single buffered']
    #allocation17 [shape = 's32[1]{0}', space=sflag, size = 0x4, scoped, tag = 'scoped memory for tpu_custom_call.1']
    #allocation18 [shape = 'u8[1024]{0}', space=vmem, size = 0x400, scoped, tag = 'input window, operand 10, single buffered']
    #allocation19 [shape = 'u8[65536]{0}', space=vmem, size = 0x10000, scoped, tag = 'input window, operand 11, single buffered']
    #allocation20 [shape = 's32[1]{0}', space=sflag, size = 0x4, scoped, tag = 'scoped memory for tpu_custom_call.1']
    #allocation21 [shape = 'u8[65536]{0}', space=vmem, size = 0x10000, scoped, tag = 'input window, operand 13, single buffered']
    #allocation22 [shape = 'u8[1024]{0}', space=vmem, size = 0x400, scoped, tag = 'output window, operand 0, single buffered']
    %20 = vsyncpa [#allocation5], 0
    %21 = vsyncpa [#allocation3], 0
    %22 = vsyncpa [#allocation8], 0
    %23 = vsyncpa [#allocation11], 0
    %24 = vsyncpa [#allocation14], 0
    %25 = vsyncpa [#allocation17], 0
    %26 = vsyncpa [#allocation20], 0
    %27 = vsyncpa [#allocation4], 0
    // Predicated region
    $region2: #{tpu_custom_call.1} parent=1 // pred_check
      _
    $region3: #{tpu_custom_call.1} parent=1 // pred_check_branch
      %29 = sbr.rel (0) target = $region5
    $region4: #{tpu_custom_call.1} parent=1 // pred_region
      %31 = vsyncadd [#allocation5], 0
      %s33 = sshll.u32 %s0, 4
      %s34 = int_to_ptr.hbm [resolvable:$true] %s33
      %36 = dma.hbm_to_smem %s34, 16, [#allocation2], [#allocation5]
    $region5: #{tpu_custom_call.1} parent=1 // pred_fallthru
      _
    // Predicated region
    $region6: #{tpu_custom_call.1} parent=1 // pred_check
      _
    $region7: #{tpu_custom_call.1} parent=1 // pred_check_branch
      %38 = sbr.rel (0) target = $region9
    $region8: #{tpu_custom_call.1} parent=1 // pred_region
      %40 = vsyncadd [#allocation3], 0
      %s41 = sshll.u32 %s1, 4
      %s42 = int_to_ptr.hbm [resolvable:$true] %s41
      %s43 = sshll.u32 [#allocation6], 4
      %s44 = int_to_ptr.vmem [resolvable:$true] %s43
      %49 = dma.hbm_to_vmem [thread:$0]  %s42, 32, %s44, [#allocation3], 16, 16, 1
    $region9: #{tpu_custom_call.1} parent=1 // pred_fallthru
      _
    // Predicated region
    $region10: #{tpu_custom_call.1} parent=1 // pred_check
      _
    $region11: #{tpu_custom_call.1} parent=1 // pred_check_branch
      %51 = sbr.rel (0) target = $region13
    $region12: #{tpu_custom_call.1} parent=1 // pred_region
      %53 = vsyncadd [#allocation8], 0
      %s54 = sshll.u32 %s2, 4
      %s55 = int_to_ptr.hbm [resolvable:$true] %s54
      %s56 = sshll.u32 [#allocation7], 4
      %s57 = int_to_ptr.vmem [resolvable:$true] %s56
      %62 = dma.hbm_to_vmem [thread:$0]  %s55, 256, %s57, [#allocation8], 128, 128, 8
    $region13: #{tpu_custom_call.1} parent=1 // pred_fallthru
      _
    // Predicated region
    $region14: #{tpu_custom_call.1} parent=1 // pred_check
      _
    $region15: #{tpu_custom_call.1} parent=1 // pred_check_branch
      %64 = sbr.rel (0) target = $region17
    $region16: #{tpu_custom_call.1} parent=1 // pred_region
      %66 = vsyncadd [#allocation8], 0
      %s67 = sshll.u32 %s3, 4
      %s68 = int_to_ptr.hbm [resolvable:$true] %s67
      %s69 = sshll.u32 [#allocation9], 4
      %s70 = int_to_ptr.vmem [resolvable:$true] %s69
      %75 = dma.hbm_to_vmem [thread:$0]  %s68, 256, %s70, [#allocation8], 128, 128, 8
    $region17: #{tpu_custom_call.1} parent=1 // pred_fallthru
      _
    // Predicated region
    $region18: #{tpu_custom_call.1} parent=1 // pred_check
      _
    $region19: #{tpu_custom_call.1} parent=1 // pred_check_branch
      %77 = sbr.rel (0) target = $region21
    $region20: #{tpu_custom_call.1} parent=1 // pred_region
      %79 = vsyncadd [#allocation11], 0
      %s80 = sshll.u32 %s4, 4
      %s81 = int_to_ptr.hbm [resolvable:$true] %s80
      %s82 = sshll.u32 [#allocation10], 4
      %s83 = int_to_ptr.vmem [resolvable:$true] %s82
      %88 = dma.hbm_to_vmem [thread:$0]  %s81, 512, %s83, [#allocation11], 128, 128, 8
    $region21: #{tpu_custom_call.1} parent=1 // pred_fallthru
      _
    // Predicated region
    $region22: #{tpu_custom_call.1} parent=1 // pred_check
      _
    $region23: #{tpu_custom_call.1} parent=1 // pred_check_branch
      %90 = sbr.rel (0) target = $region25
    $region24: #{tpu_custom_call.1} parent=1 // pred_region
      %92 = vsyncadd [#allocation11], 0
      %s94 = sshll.u32 %s5, 4
      %s95 = int_to_ptr.hbm [resolvable:$true] %s94
      %s96 = sshll.u32 [#allocation12], 4
      %s97 = int_to_ptr.vmem [resolvable:$true] %s96
      %99 = dma.hbm_to_vmem [thread:$0]  %s95, 32, %s97, [#allocation11]
    $region25: #{tpu_custom_call.1} parent=1 // pred_fallthru
      _
    // Predicated region
    $region26: #{tpu_custom_call.1} parent=1 // pred_check
      _
    $region27: #{tpu_custom_call.1} parent=1 // pred_check_branch
      %101 = sbr.rel (0) target = $region29
    $region28: #{tpu_custom_call.1} parent=1 // pred_region
      %103 = vsyncadd [#allocation14], 0
      %s104 = sshll.u32 %s6, 4
      %s105 = int_to_ptr.hbm [resolvable:$true] %s104
      %s106 = sshll.u32 [#allocation13], 4
      %s107 = int_to_ptr.vmem [resolvable:$true] %s106
      %112 = dma.hbm_to_vmem [thread:$0]  %s105, 1024, %s107, [#allocation14], 128, 128, 8
    $region29: #{tpu_custom_call.1} parent=1 // pred_fallthru
      _
    // Predicated region
    $region30: #{tpu_custom_call.1} parent=1 // pred_check
      _
    $region31: #{tpu_custom_call.1} parent=1 // pred_check_branch
      %114 = sbr.rel (0) target = $region33
    $region32: #{tpu_custom_call.1} parent=1 // pred_region
      %116 = vsyncadd [#allocation14], 0
      %s118 = sshll.u32 %s7, 4
      %s119 = int_to_ptr.hbm [resolvable:$true] %s118
      %s120 = sshll.u32 [#allocation15], 4
      %s121 = int_to_ptr.vmem [resolvable:$true] %s120
      %123 = dma.hbm_to_vmem [thread:$0]  %s119, 32, %s121, [#allocation14]
    $region33: #{tpu_custom_call.1} parent=1 // pred_fallthru
      _
    // Predicated region
    $region34: #{tpu_custom_call.1} parent=1 // pred_check
      _
    $region35: #{tpu_custom_call.1} parent=1 // pred_check_branch
      %125 = sbr.rel (0) target = $region37
    $region36: #{tpu_custom_call.1} parent=1 // pred_region
      _
    $region37: #{tpu_custom_call.1} parent=1 // pred_fallthru
      _
    // Predicated region
    $region38: #{tpu_custom_call.1} parent=1 // pred_check
      _
    $region39: #{tpu_custom_call.1} parent=1 // pred_check_branch
      %127 = sbr.rel (0) target = $region41
    $region40: #{tpu_custom_call.1} parent=1 // pred_region
      %129 = vsyncadd [#allocation17], 0
      %s130 = sshll.u32 %s9, 4
      %s131 = int_to_ptr.hbm [resolvable:$true] %s130
      %s132 = sshll.u32 [#allocation16], 4
      %s133 = int_to_ptr.vmem [resolvable:$true] %s132
      %138 = dma.hbm_to_vmem [thread:$0]  %s131, 512, %s133, [#allocation17], 128, 128, 8
    $region41: #{tpu_custom_call.1} parent=1 // pred_fallthru
      _
    // Predicated region
    $region42: #{tpu_custom_call.1} parent=1 // pred_check
      _
    $region43: #{tpu_custom_call.1} parent=1 // pred_check_branch
      %140 = sbr.rel (0) target = $region45
    $region44: #{tpu_custom_call.1} parent=1 // pred_region
      %142 = vsyncadd [#allocation17], 0
      %s144 = sshll.u32 %s10, 4
      %s145 = int_to_ptr.hbm [resolvable:$true] %s144
      %s146 = sshll.u32 [#allocation18], 4
      %s147 = int_to_ptr.vmem [resolvable:$true] %s146
      %149 = dma.hbm_to_vmem [thread:$0]  %s145, 32, %s147, [#allocation17]
    $region45: #{tpu_custom_call.1} parent=1 // pred_fallthru
      _
    // Predicated region
    $region46: #{tpu_custom_call.1} parent=1 // pred_check
      _
    $region47: #{tpu_custom_call.1} parent=1 // pred_check_branch
      %151 = sbr.rel (0) target = $region49
    $region48: #{tpu_custom_call.1} parent=1 // pred_region
      %153 = vsyncadd [#allocation20], 0
      %s154 = sshll.u32 %s11, 4
      %s155 = int_to_ptr.hbm [resolvable:$true] %s154
      %s156 = sshll.u32 [#allocation19], 4
      %s157 = int_to_ptr.vmem [resolvable:$true] %s156
      %162 = dma.hbm_to_vmem [thread:$0]  %s155, 2048, %s157, [#allocation20], 64, 64, 4
    $region49: #{tpu_custom_call.1} parent=1 // pred_fallthru
      _
    // Predicated region
    $region50: #{tpu_custom_call.1} parent=1 // pred_check
      _
    $region51: #{tpu_custom_call.1} parent=1 // pred_check_branch
      %164 = sbr.rel (0) target = $region53
    $region52: #{tpu_custom_call.1} parent=1 // pred_region
      _
    $region53: #{tpu_custom_call.1} parent=1 // pred_fallthru
      _
    // Predicated region
    $region54: #{tpu_custom_call.1} parent=1 // pred_check
      _
    $region55: #{tpu_custom_call.1} parent=1 // pred_check_branch
      %166 = sbr.rel (0) target = $region57
    $region56: #{tpu_custom_call.1} parent=1 // pred_region
      %168 = vsyncadd [#allocation20], 0
      %s169 = sshll.u32 %s13, 4
      %s170 = int_to_ptr.hbm [resolvable:$true] %s169
      %s171 = sshll.u32 [#allocation21], 4
      %s172 = int_to_ptr.vmem [resolvable:$true] %s171
      %177 = dma.hbm_to_vmem [thread:$0]  %s170, 2048, %s172, [#allocation20], 64, 64, 4
    $region57: #{tpu_custom_call.1} parent=1 // pred_fallthru
      _
    // Predicated region
    $region58: #{tpu_custom_call.1} parent=1 // pred_check
      _
    $region59: #{tpu_custom_call.1} parent=1 // pred_check_branch
      %179 = sbr.rel (0) target = $region61
    $region60: #{tpu_custom_call.1} parent=1 // pred_region
      _
    $region61: #{tpu_custom_call.1} parent=1 // pred_fallthru
      _
    // Predicated region
    $region62: #{tpu_custom_call.1} parent=1 // pred_check
      _
    $region63: #{tpu_custom_call.1} parent=1 // pred_check_branch
      %181 = sbr.rel (0) target = $region65
    $region64: #{tpu_custom_call.1} parent=1 // pred_region
      %183 = dma.done [#allocation5], 16
    $region65: #{tpu_custom_call.1} parent=1 // pred_fallthru
      _
    // Predicated region
    $region66: #{tpu_custom_call.1} parent=1 // pred_check
      _
    $region67: #{tpu_custom_call.1} parent=1 // pred_check_branch
      %185 = sbr.rel (0) target = $region69
    $region68: #{tpu_custom_call.1} parent=1 // pred_region
      %187 = dma.done [#allocation3], 32
    $region69: #{tpu_custom_call.1} parent=1 // pred_fallthru
      _
    // Predicated region
    $region70: #{tpu_custom_call.1} parent=1 // pred_check
      _
    $region71: #{tpu_custom_call.1} parent=1 // pred_check_branch
      %189 = sbr.rel (0) target = $region73
    $region72: #{tpu_custom_call.1} parent=1 // pred_region
      %191 = dma.done [#allocation8], 256
    $region73: #{tpu_custom_call.1} parent=1 // pred_fallthru
      _
    // Predicated region
    $region74: #{tpu_custom_call.1} parent=1 // pred_check
      _
    $region75: #{tpu_custom_call.1} parent=1 // pred_check_branch
      %193 = sbr.rel (0) target = $region77
    $region76: #{tpu_custom_call.1} parent=1 // pred_region
      %195 = dma.done [#allocation8], 256
    $region77: #{tpu_custom_call.1} parent=1 // pred_fallthru
      _
    // Predicated region
    $region78: #{tpu_custom_call.1} parent=1 // pred_check
      _
    $region79: #{tpu_custom_call.1} parent=1 // pred_check_branch
      %197 = sbr.rel (0) target = $region81
    $region80: #{tpu_custom_call.1} parent=1 // pred_region
      %199 = dma.done [#allocation11], 512
    $region81: #{tpu_custom_call.1} parent=1 // pred_fallthru
      _
    // Predicated region
    $region82: #{tpu_custom_call.1} parent=1 // pred_check
      _
    $region83: #{tpu_custom_call.1} parent=1 // pred_check_branch
      %201 = sbr.rel (0) target = $region85
    $region84: #{tpu_custom_call.1} parent=1 // pred_region
      %203 = dma.done [#allocation11], 32
    $region85: #{tpu_custom_call.1} parent=1 // pred_fallthru
      _
    // Predicated region
    $region86: #{tpu_custom_call.1} parent=1 // pred_check
      _
    $region87: #{tpu_custom_call.1} parent=1 // pred_check_branch
      %205 = sbr.rel (0) target = $region89
    $region88: #{tpu_custom_call.1} parent=1 // pred_region
      %207 = dma.done [#allocation14], 1024
    $region89: #{tpu_custom_call.1} parent=1 // pred_fallthru
      _
    // Predicated region
    $region90: #{tpu_custom_call.1} parent=1 // pred_check
      _
    $region91: #{tpu_custom_call.1} parent=1 // pred_check_branch
      %209 = sbr.rel (0) target = $region93
    $region92: #{tpu_custom_call.1} parent=1 // pred_region
      %211 = dma.done [#allocation14], 32
    $region93: #{tpu_custom_call.1} parent=1 // pred_fallthru
      _
    // Predicated region
    $region94: #{tpu_custom_call.1} parent=1 // pred_check
      _
    $region95: #{tpu_custom_call.1} parent=1 // pred_check_branch
      %213 = sbr.rel (0) target = $region97
    $region96: #{tpu_custom_call.1} parent=1 // pred_region
      %215 = dma.done [#allocation17], 512
    $region97: #{tpu_custom_call.1} parent=1 // pred_fallthru
      _
    // Predicated region
    $region98: #{tpu_custom_call.1} parent=1 // pred_check
      _
    $region99: #{tpu_custom_call.1} parent=1 // pred_check_branch
      %217 = sbr.rel (0) target = $region101
    $region100: #{tpu_custom_call.1} parent=1 // pred_region
      %219 = dma.done [#allocation17], 32
    $region101: #{tpu_custom_call.1} parent=1 // pred_fallthru
      _
    // Predicated region
    $region102: #{tpu_custom_call.1} parent=1 // pred_check
      _
    $region103: #{tpu_custom_call.1} parent=1 // pred_check_branch
      %221 = sbr.rel (0) target = $region105
    $region104: #{tpu_custom_call.1} parent=1 // pred_region
      %223 = dma.done [#allocation20], 2048
    $region105: #{tpu_custom_call.1} parent=1 // pred_fallthru
      _
    // Predicated region
    $region106: #{tpu_custom_call.1} parent=1 // pred_check
      _
    $region107: #{tpu_custom_call.1} parent=1 // pred_check_branch
      %225 = sbr.rel (0) target = $region109
    $region108: #{tpu_custom_call.1} parent=1 // pred_region
      %227 = dma.done [#allocation20], 2048
    $region109: #{tpu_custom_call.1} parent=1 // pred_fallthru
      _
    %228 = sfence
    %v230 = vld [vmem:[#allocation7] sm:$0xff]
    %v231 = vld [vmem:[#allocation7 + $0x8] sm:$0xff]
    %v232 = vld [vmem:[#allocation9] sm:$0xff]
    %v233 = vld [vmem:[#allocation9 + $0x8] sm:$0xff]
    %v234 = vpack.c.bf16 %v231, %v230
    %v235 = vpack.c.bf16 %v233, %v232
    %v236 = vld [vmem:[#allocation10] sm:$0xff]
    %v237 = vld [vmem:[#allocation10 + $0x8] sm:$0xff]
    %v238 = vld [vmem:[#allocation10 + $0x10] sm:$0xff]
    %v239 = vld [vmem:[#allocation10 + $0x18] sm:$0xff]
    %v240 = vld [vmem:[#allocation12] sm:$0x3]
    %v242 = vperm.slane %v240, 0
    %v243 = vperm.slane %v240, 1
    %v250 = vunpack.c.l.b16 %v236
    %v251 = vunpack.c.h.b16 %v236
    %v252 = vunpack.c.l.b16 %v237
    %v253 = vunpack.c.h.b16 %v237
    %v254 = vunpack.c.l.b16 %v238
    %v255 = vunpack.c.h.b16 %v238
    %v256 = vunpack.c.l.b16 %v239
    %v257 = vunpack.c.h.b16 %v239
    %v258 = vpack.c.b16 %v252, %v250
    %v259 = vpack.c.b16 %v253, %v251
    %v260 = vpack.c.b16 %v256, %v254
    %v261 = vpack.c.b16 %v257, %v255
    %vm266 = vcmask 261120
    %v268 = vsel %vm266, %v234, 0
    %270 = vmatpush.bf16.msra.mxu0 0
    %271 = vmatpush.bf16.msra.mxu0 0
    %272 = vmatpush.bf16.msra.mxu0 0
    %273 = vmatpush.bf16.msra.mxu0 0
    %274 = vmatpush.bf16.msra.mxu0 0
    %275 = vmatpush.bf16.msra.mxu0 0
    %276 = vmatpush.bf16.msra.mxu0 %v260
    %277 = vmatpush.bf16.msra.mxu0 %v258
    %278 = vmatmul.bf16.gmra.mxu0 %v268
    %v279 = vpop.f32.mrf.mxu0
    %v280 = vadd.f32 %v242, %v279
    %v281 = vpop.f32.mrf.mxu0
    %v282 = vadd.f32 %v242, %v281
    %283 = vdwg.mxu0
    %284 = vmatpush.bf16.msra.mxu0 0
    %285 = vmatpush.bf16.msra.mxu0 0
    %286 = vmatpush.bf16.msra.mxu0 0
    %287 = vmatpush.bf16.msra.mxu0 0
    %288 = vmatpush.bf16.msra.mxu0 0
    %289 = vmatpush.bf16.msra.mxu0 0
    %290 = vmatpush.bf16.msra.mxu0 %v261
    %291 = vmatpush.bf16.msra.mxu0 %v259
    %292 = vmatmul.bf16.gmra.mxu0 %v268
    %v293 = vpop.f32.mrf.mxu0
    %v294 = vadd.f32 %v243, %v293
    %v295 = vpop.f32.mrf.mxu0
    %v296 = vadd.f32 %v243, %v295
    %297 = vdwg.mxu0
    %v298 = vmax.f32 %v280, 0.0
    %v299 = vmax.f32 %v294, 0.0
    %v300 = vmax.f32 %v282, 0.0
    %v301 = vmax.f32 %v296, 0.0
    %v302 = vld [vmem:[#allocation13] sm:$0xff]
    %v303 = vld [vmem:[#allocation13 + $0x8] sm:$0xff]
    %v304 = vld [vmem:[#allocation13 + $0x10] sm:$0xff]
    %v305 = vld [vmem:[#allocation13 + $0x18] sm:$0xff]
    %v306 = vld [vmem:[#allocation13 + $0x20] sm:$0xff]
    %v307 = vld [vmem:[#allocation13 + $0x28] sm:$0xff]
    %v308 = vld [vmem:[#allocation13 + $0x30] sm:$0xff]
    %v309 = vld [vmem:[#allocation13 + $0x38] sm:$0xff]
    %v310 = vld [vmem:[#allocation15] sm:$0x3]
    %v312 = vperm.slane %v310, 0
    %v313 = vperm.slane %v310, 1
    %v324 = vunpack.c.l.b16 %v302
    %v325 = vunpack.c.h.b16 %v302
    %v326 = vunpack.c.l.b16 %v303
    %v327 = vunpack.c.h.b16 %v303
    %v328 = vunpack.c.l.b16 %v304
    %v329 = vunpack.c.h.b16 %v304
    %v330 = vunpack.c.l.b16 %v305
    %v331 = vunpack.c.h.b16 %v305
    %v332 = vunpack.c.l.b16 %v306
    %v333 = vunpack.c.h.b16 %v306
    %v334 = vunpack.c.l.b16 %v307
    %v335 = vunpack.c.h.b16 %v307
    %v336 = vunpack.c.l.b16 %v308
    %v337 = vunpack.c.h.b16 %v308
    %v338 = vunpack.c.l.b16 %v309
    %v339 = vunpack.c.h.b16 %v309
    %v340 = vpack.c.b16 %v326, %v324
    %v341 = vpack.c.b16 %v327, %v325
    %v342 = vpack.c.b16 %v330, %v328
    %v343 = vpack.c.b16 %v331, %v329
    %v344 = vpack.c.b16 %v334, %v332
    %v345 = vpack.c.b16 %v335, %v333
    %v346 = vpack.c.b16 %v338, %v336
    %v347 = vpack.c.b16 %v339, %v337
    %vm356 = vcmask 523264
    %v358 = vsel %vm356, %v235, 0
    %360 = vmatpush.bf16.msra.mxu0 0
    %361 = vmatpush.bf16.msra.mxu0 0
    %362 = vmatpush.bf16.msra.mxu0 0
    %363 = vmatpush.bf16.msra.mxu0 0
    %364 = vmatpush.bf16.msra.mxu0 %v346
    %365 = vmatpush.bf16.msra.mxu0 %v344
    %366 = vmatpush.bf16.msra.mxu0 %v342
    %367 = vmatpush.bf16.msra.mxu0 %v340
    %368 = vmatmul.bf16.gmra.mxu0 %v358
    %v369 = vpop.f32.mrf.mxu0
    %v370 = vadd.f32 %v312, %v369
    %v371 = vpop.f32.mrf.mxu0
    %v372 = vadd.f32 %v312, %v371
    %373 = vdwg.mxu0
    %374 = vmatpush.bf16.msra.mxu0 0
    %375 = vmatpush.bf16.msra.mxu0 0
    %376 = vmatpush.bf16.msra.mxu0 0
    %377 = vmatpush.bf16.msra.mxu0 0
    %378 = vmatpush.bf16.msra.mxu0 %v347
    %379 = vmatpush.bf16.msra.mxu0 %v345
    %380 = vmatpush.bf16.msra.mxu0 %v343
    %381 = vmatpush.bf16.msra.mxu0 %v341
    %382 = vmatmul.bf16.gmra.mxu0 %v358
    %v383 = vpop.f32.mrf.mxu0
    %v384 = vadd.f32 %v313, %v383
    %v385 = vpop.f32.mrf.mxu0
    %v386 = vadd.f32 %v313, %v385
    %387 = vdwg.mxu0
    %v388 = vmax.f32 %v370, 0.0
    %v389 = vmax.f32 %v384, 0.0
    %v390 = vmax.f32 %v372, 0.0
    %v391 = vmax.f32 %v386, 0.0
    %v392 = vld [vmem:[%s8] sm:$0xf]
    %v394 = vrot.slane %v392, 1
    %v395 = vrot.slane %v392, 2
    %v396 = vrot.slane %v392, 3
    %vm397 = vcmask 1040384
    %v400 = vsel %vm397, %v392, %v394
    %vm401 = vcmask 1042434
    %v404 = vsel %vm401, %v395, %v396
    %vm405 = vcmask 1041408
    %v406 = vsel %vm405, %v400, %v404
    %vm408 = vcmask 1041409
    %v409 = vsel %vm408, %v392, %v394
    %vm410 = vcmask 1043459
    %v411 = vsel %vm410, %v395, %v396
    %vm412 = vcmask 1042433
    %v413 = vsel %vm412, %v409, %v411
    %v415 = vrot.slane %v413, 1
    %v416 = vunpack.i.l.s16 %v406
    %v417 = vunpack.i.h.s16 %v406
    %v418 = vunpack.i.l.s16 %v415
    %v419 = vunpack.i.h.s16 %v415
    %v420 = vpack.c.bf16 %v389, %v388
    %v421 = vpack.c.bf16 %v391, %v390
    %v422 = vpack.i.b16 %v416, %v416
    %v423 = vpack.i.b16 %v417, %v417
    %v424 = vpack.i.b16 %v418, %v418
    %v425 = vpack.i.b16 %v419, %v419
    %v426 = vperm.slane %v422, 0
    %v427 = vperm.slane %v422, 1
    %v428 = vperm.slane %v423, 0
    %v429 = vperm.slane %v423, 1
    %v430 = vperm.slane %v424, 0
    %v431 = vperm.slane %v424, 1
    %v432 = vperm.slane %v425, 0
    %v433 = vperm.slane %v425, 1
    %v435 = vpack.i.b16 %v426, %v426
    %v437 = vperm.slane %v435, 0
    %v439 = vpack.i.b16 %v427, %v427
    %v441 = vperm.slane %v439, 0
    %v443 = vpack.i.b16 %v428, %v428
    %v445 = vperm.slane %v443, 0
    %v447 = vpack.i.b16 %v429, %v429
    %v449 = vperm.slane %v447, 0
    %v451 = vpack.i.b16 %v430, %v430
    %v453 = vperm.slane %v451, 0
    %v455 = vpack.i.b16 %v431, %v431
    %v457 = vperm.slane %v455, 0
    %v459 = vpack.i.b16 %v432, %v432
    %v461 = vperm.slane %v459, 0
    %v463 = vpack.i.b16 %v433, %v433
    %v465 = vperm.slane %v463, 0
    %v466 = vunpack.c.l.bf16 %v437
    %v467 = vunpack.c.l.bf16 %v441
    %v468 = vunpack.c.l.bf16 %v445
    %v469 = vunpack.c.l.bf16 %v449
    %v470 = vunpack.c.l.bf16 %v453
    %v471 = vunpack.c.l.bf16 %v457
    %v472 = vunpack.c.l.bf16 %v461
    %v473 = vunpack.c.l.bf16 %v465
    %v474 = vunpack.c.l.bf16 %v420
    %v475 = vunpack.c.h.bf16 %v420
    %v476 = vunpack.c.l.bf16 %v421
    %v477 = vunpack.c.h.bf16 %v421
    %v478 = vmul.f32 %v466, %v474
    %v479 = vmul.f32 %v467, %v475
    %v480 = vmul.f32 %v468, %v474
    %v481 = vmul.f32 %v469, %v475
    %v482 = vmul.f32 %v470, %v474
    %v483 = vmul.f32 %v471, %v475
    %v484 = vmul.f32 %v472, %v474
    %v485 = vmul.f32 %v473, %v475
    %v486 = vmul.f32 %v466, %v476
    %v487 = vmul.f32 %v467, %v477
    %v488 = vmul.f32 %v468, %v476
    %v489 = vmul.f32 %v469, %v477
    %v490 = vmul.f32 %v470, %v476
    %v491 = vmul.f32 %v471, %v477
    %v492 = vmul.f32 %v472, %v476
    %v493 = vmul.f32 %v473, %v477
    %v494 = vpack.c.bf16 %v479, %v478
    %v495 = vpack.c.bf16 %v481, %v480
    %v496 = vpack.c.bf16 %v483, %v482
    %v497 = vpack.c.bf16 %v485, %v484
    %v498 = vpack.c.bf16 %v487, %v486
    %v499 = vpack.c.bf16 %v489, %v488
    %v500 = vpack.c.bf16 %v491, %v490
    %v501 = vpack.c.bf16 %v493, %v492
    %v502 = vpack.c.bf16 %v299, %v298
    %v503 = vpack.c.bf16 %v301, %v300
    %v508 = vunpack.c.l.b16 %v494
    %v509 = vunpack.c.h.b16 %v494
    %v510 = vunpack.c.l.b16 %v495
    %v511 = vunpack.c.h.b16 %v495
    %v512 = vunpack.c.l.b16 %v496
    %v513 = vunpack.c.h.b16 %v496
    %v514 = vunpack.c.l.b16 %v497
    %v515 = vunpack.c.h.b16 %v497
    %v516 = vpack.c.b16 %v510, %v508
    %v517 = vpack.c.b16 %v511, %v509
    %v518 = vpack.c.b16 %v514, %v512
    %v519 = vpack.c.b16 %v515, %v513
    %v523 = vunpack.c.l.b16 %v502
    %v524 = vunpack.c.h.b16 %v502
    %v525 = vpack.c.b16 %v523, %v523
    %v526 = vpack.c.b16 %v524, %v524
    %v529 = vsel %vm356, %v517, 0
    %v532 = vsel %vm356, %v519, 0
    %v535 = vsel %vm356, %v526, 0
    %537 = vmatpush.bf16.xpose.msra.mxu0 0
    %538 = vmatpush.bf16.xpose.msra.mxu0 0
    %539 = vmatpush.bf16.xpose.msra.mxu0 0
    %540 = vmatpush.bf16.xpose.msra.mxu0 0
    %541 = vmatpush.bf16.xpose.msra.mxu0 0
    %542 = vmatpush.bf16.xpose.msra.mxu0 0
    %543 = vmatpush.bf16.xpose.msra.mxu0 0
    %544 = vmatpush.bf16.xpose.msra.mxu0 %v525
    %545 = vmatmul.bf16.gmra.mxu0 %v516
    %v546 = vpop.f32.mrf.mxu0
    %v547 = vadd.f32 0.0, %v546
    %v548 = vpop.f32.mrf.mxu0
    %v549 = vadd.f32 0.0, %v548
    %550 = vmatmul.bf16.gmra.mxu0 %v518
    %v551 = vpop.f32.mrf.mxu0
    %v552 = vadd.f32 0.0, %v551
    %v553 = vpop.f32.mrf.mxu0
    %v554 = vadd.f32 0.0, %v553
    %555 = vdwg.mxu0
    %556 = vmatpush.bf16.xpose.msra.mxu0 0
    %557 = vmatpush.bf16.xpose.msra.mxu0 0
    %558 = vmatpush.bf16.xpose.msra.mxu0 0
    %559 = vmatpush.bf16.xpose.msra.mxu0 0
    %560 = vmatpush.bf16.xpose.msra.mxu0 0
    %561 = vmatpush.bf16.xpose.msra.mxu0 0
    %562 = vmatpush.bf16.xpose.msra.mxu0 0
    %563 = vmatpush.bf16.xpose.msra.mxu0 %v535
    %564 = vmatmul.bf16.gmra.mxu0 %v529
    %v565 = vpop.f32.mrf.mxu0
    %v566 = vadd.f32 %v547, %v565
    %v567 = vpop.f32.mrf.mxu0
    %v568 = vadd.f32 %v549, %v567
    %569 = vmatmul.bf16.gmra.mxu0 %v532
    %v570 = vpop.f32.mrf.mxu0
    %v571 = vadd.f32 %v552, %v570
    %v572 = vpop.f32.mrf.mxu0
    %v573 = vadd.f32 %v554, %v572
    %574 = vdwg.mxu0
    %v579 = vunpack.c.l.b16 %v498
    %v580 = vunpack.c.h.b16 %v498
    %v581 = vunpack.c.l.b16 %v499
    %v582 = vunpack.c.h.b16 %v499
    %v583 = vunpack.c.l.b16 %v500
    %v584 = vunpack.c.h.b16 %v500
    %v585 = vunpack.c.l.b16 %v501
    %v586 = vunpack.c.h.b16 %v501
    %v587 = vpack.c.b16 %v581, %v579
    %v588 = vpack.c.b16 %v582, %v580
    %v589 = vpack.c.b16 %v585, %v583
    %v590 = vpack.c.b16 %v586, %v584
    %v594 = vunpack.c.l.b16 %v503
    %v595 = vunpack.c.h.b16 %v503
    %v596 = vpack.c.b16 %v594, %v594
    %v597 = vpack.c.b16 %v595, %v595
    %v600 = vsel %vm356, %v588, 0
    %v603 = vsel %vm356, %v590, 0
    %v606 = vsel %vm356, %v597, 0
    %608 = vmatpush.bf16.xpose.msra.mxu0 0
    %609 = vmatpush.bf16.xpose.msra.mxu0 0
    %610 = vmatpush.bf16.xpose.msra.mxu0 0
    %611 = vmatpush.bf16.xpose.msra.mxu0 0
    %612 = vmatpush.bf16.xpose.msra.mxu0 0
    %613 = vmatpush.bf16.xpose.msra.mxu0 0
    %614 = vmatpush.bf16.xpose.msra.mxu0 0
    %615 = vmatpush.bf16.xpose.msra.mxu0 %v596
    %616 = vmatmul.bf16.gmra.mxu0 %v587
    %v617 = vpop.f32.mrf.mxu0
    %v618 = vadd.f32 0.0, %v617
    %v619 = vpop.f32.mrf.mxu0
    %v620 = vadd.f32 0.0, %v619
    %621 = vmatmul.bf16.gmra.mxu0 %v589
    %v622 = vpop.f32.mrf.mxu0
    %v623 = vadd.f32 0.0, %v622
    %v624 = vpop.f32.mrf.mxu0
    %v625 = vadd.f32 0.0, %v624
    %626 = vdwg.mxu0
    %627 = vmatpush.bf16.xpose.msra.mxu0 0
    %628 = vmatpush.bf16.xpose.msra.mxu0 0
    %629 = vmatpush.bf16.xpose.msra.mxu0 0
    %630 = vmatpush.bf16.xpose.msra.mxu0 0
    %631 = vmatpush.bf16.xpose.msra.mxu0 0
    %632 = vmatpush.bf16.xpose.msra.mxu0 0
    %633 = vmatpush.bf16.xpose.msra.mxu0 0
    %634 = vmatpush.bf16.xpose.msra.mxu0 %v606
    %635 = vmatmul.bf16.gmra.mxu0 %v600
    %v636 = vpop.f32.mrf.mxu0
    %v637 = vadd.f32 %v618, %v636
    %v638 = vpop.f32.mrf.mxu0
    %v639 = vadd.f32 %v620, %v638
    %640 = vmatmul.bf16.gmra.mxu0 %v603
    %v641 = vpop.f32.mrf.mxu0
    %v642 = vadd.f32 %v623, %v641
    %v643 = vpop.f32.mrf.mxu0
    %v644 = vadd.f32 %v625, %v643
    %645 = vdwg.mxu0
    %v646 = vld [vmem:[#allocation6] sm:$0x1]
    %v647 = vld [vmem:[#allocation6 + $0x1] sm:$0x1]
    %v648 = vld [vmem:[#allocation16] sm:$0xff]
    %v649 = vld [vmem:[#allocation16 + $0x8] sm:$0xff]
    %v650 = vld [vmem:[#allocation16 + $0x10] sm:$0xff]
    %v651 = vld [vmem:[#allocation16 + $0x18] sm:$0xff]
    %v652 = vld [vmem:[#allocation18] sm:$0x3]
    %v654 = vperm.slane %v652, 0
    %v655 = vperm.slane %v652, 1
    %v662 = vunpack.c.l.b16 %v648
    %v663 = vunpack.c.h.b16 %v648
    %v664 = vunpack.c.l.b16 %v649
    %v665 = vunpack.c.h.b16 %v649
    %v666 = vunpack.c.l.b16 %v650
    %v667 = vunpack.c.h.b16 %v650
    %v668 = vunpack.c.l.b16 %v651
    %v669 = vunpack.c.h.b16 %v651
    %v670 = vpack.c.b16 %v664, %v662
    %v671 = vpack.c.b16 %v665, %v663
    %v672 = vpack.c.b16 %v668, %v666
    %v673 = vpack.c.b16 %v669, %v667
    %678 = vmatpush.bf16.msra.mxu0 0
    %679 = vmatpush.bf16.msra.mxu0 0
    %680 = vmatpush.bf16.msra.mxu0 0
    %681 = vmatpush.bf16.msra.mxu0 0
    %682 = vmatpush.bf16.msra.mxu0 0
    %683 = vmatpush.bf16.msra.mxu0 0
    %684 = vmatpush.bf16.msra.mxu0 %v672
    %685 = vmatpush.bf16.msra.mxu0 %v670
    %686 = vmatmul.bf16.gmra.mxu0 %v268
    %v687 = vpop.f32.mrf.mxu0
    %v688 = vadd.f32 %v654, %v687
    %v689 = vpop.f32.mrf.mxu0
    %v690 = vadd.f32 %v654, %v689
    %691 = vdwg.mxu0
    %692 = vmatpush.bf16.msra.mxu0 0
    %693 = vmatpush.bf16.msra.mxu0 0
    %694 = vmatpush.bf16.msra.mxu0 0
    %695 = vmatpush.bf16.msra.mxu0 0
    %696 = vmatpush.bf16.msra.mxu0 0
    %697 = vmatpush.bf16.msra.mxu0 0
    %698 = vmatpush.bf16.msra.mxu0 %v673
    %699 = vmatpush.bf16.msra.mxu0 %v671
    %700 = vmatmul.bf16.gmra.mxu0 %v268
    %v701 = vpop.f32.mrf.mxu0
    %v702 = vadd.f32 %v655, %v701
    %v703 = vpop.f32.mrf.mxu0
    %v704 = vadd.f32 %v655, %v703
    %705 = vdwg.mxu0
    %v706 = vmax.f32 %v688, 0.0
    %v707 = vmax.f32 %v702, 0.0
    %v708 = vmax.f32 %v690, 0.0
    %v709 = vmax.f32 %v704, 0.0
    %s710 = sld [smem:[#allocation2]]
    %v711 = vstv %s710
    %v712 = vadd.f32 %v566, %v711
    %v713 = vadd.f32 %v637, %v711
    %v716 = vperm.slane %v646, 0
    %v717 = vperm.slane %v647, 0
    %v720 = vadd.f32 %v712, %v716
    %v721 = vadd.f32 %v713, %v717
    %vm722 = vcmask 64512
    %v723 = vsel %vm722, %v720, -inf
    %724 = vmax.xlane.f32.xlu0 %v723
    %v725 = vpop.xlane.xlu0 %724
    %v726 = vsel %vm722, %v721, -inf
    %727 = vmax.xlane.f32.xlu0 %v726
    %v728 = vpop.xlane.xlu0 %727
    %v729 = vrot.slane %v725, 4
    %v730 = vmax.f32 %v725, %v729
    %v731 = vrot.slane %v730, 2
    %v732 = vmax.f32 %v730, %v731
    %v733 = vrot.slane %v732, 1
    %v734 = vmax.f32 %v732, %v733
    %v735 = vrot.slane %v728, 4
    %v736 = vmax.f32 %v728, %v735
    %v737 = vrot.slane %v736, 2
    %v738 = vmax.f32 %v736, %v737
    %v739 = vrot.slane %v738, 1
    %v740 = vmax.f32 %v738, %v739
    %v741 = vsub.f32 %v720, %v734
    %v742 = vsub.f32 %v721, %v740
    %v743 = vmul.f32 %v741, 1.442695
    %v744 = vpow.pop %v743
    %v745 = vmul.f32 %v742, 1.442695
    %v746 = vpow.pop %v745
    %v747 = vsel %vm722, %v744, 0.0
    %748 = vadd.xlane.f32.xlu0 %v747
    %v749 = vpop.xlane.xlu0 %748
    %v750 = vsel %vm722, %v746, 0.0
    %751 = vadd.xlane.f32.xlu0 %v750
    %v752 = vpop.xlane.xlu0 %751
    %v753 = vrot.slane %v749, 4
    %v754 = vadd.f32 %v749, %v753
    %v755 = vrot.slane %v754, 2
    %v756 = vadd.f32 %v754, %v755
    %v757 = vrot.slane %v756, 1
    %v758 = vadd.f32 %v756, %v757
    %v759 = vrot.slane %v752, 4
    %v760 = vadd.f32 %v752, %v759
    %v761 = vrot.slane %v760, 2
    %v762 = vadd.f32 %v760, %v761
    %v763 = vrot.slane %v762, 1
    %v764 = vadd.f32 %v762, %v763
    %v765 = vrcp.pop %v758
    %v766 = vrcp.pop %v764
    %v767 = vmul.f32 %v744, %v765
    %v768 = vmul.f32 %v746, %v766
    %v769 = vld [vmem:[#allocation19] sm:$0xf]
    %v770 = vld [vmem:[#allocation19 + $0x4] sm:$0xf]
    %v771 = vld [vmem:[#allocation19 + $0x8] sm:$0xf]
    %v772 = vld [vmem:[#allocation19 + $0xc] sm:$0xf]
    %v773 = vld [vmem:[#allocation19 + $0x10] sm:$0xf]
    %v774 = vld [vmem:[#allocation19 + $0x14] sm:$0xf]
    %v775 = vld [vmem:[#allocation19 + $0x18] sm:$0xf]
    %v776 = vld [vmem:[#allocation19 + $0x1c] sm:$0xf]
    %v777 = vld [vmem:[%s12] sm:$0x1]
    %v779 = vperm.slane %v777, 0
    %v789 = vunpack.c.l.b16 %v769
    %v790 = vunpack.c.l.b16 %v770
    %v791 = vunpack.c.l.b16 %v771
    %v792 = vunpack.c.l.b16 %v772
    %v793 = vunpack.c.l.b16 %v773
    %v794 = vunpack.c.l.b16 %v774
    %v795 = vunpack.c.l.b16 %v775
    %v796 = vunpack.c.l.b16 %v776
    %v797 = vpack.c.b16 %v790, %v789
    %v798 = vpack.c.b16 %v792, %v791
    %v799 = vpack.c.b16 %v794, %v793
    %v800 = vpack.c.b16 %v796, %v795
    %805 = vmatpush.bf16.msra.mxu0 0
    %806 = vmatpush.bf16.msra.mxu0 0
    %807 = vmatpush.bf16.msra.mxu0 0
    %808 = vmatpush.bf16.msra.mxu0 0
    %809 = vmatpush.bf16.msra.mxu0 %v800
    %810 = vmatpush.bf16.msra.mxu0 %v799
    %811 = vmatpush.bf16.msra.mxu0 %v798
    %812 = vmatpush.bf16.msra.mxu0 %v797
    %813 = vmatmul.bf16.gmra.mxu0 %v358
    %v814 = vpop.f32.mrf.mxu0
    %v815 = vadd.f32 %v779, %v814
    %v816 = vpop.f32.mrf.mxu0
    %v817 = vadd.f32 %v779, %v816
    %818 = vdwg.mxu0
    %v819 = vmax.f32 %v815, 0.0
    %v820 = vmax.f32 %v817, 0.0
    %v821 = vpack.c.bf16 %v767, %v767
    %v822 = vpack.c.bf16 %v768, %v768
    %v823 = vpack.c.bf16 %v706, %v706
    %v824 = vpack.c.bf16 %v708, %v708
    %v826 = vsel %vm722, %v821, 0
    %vm828 = vcmask 1043456
    %v830 = vsel %vm828, %v823, 0
    %832 = vmatpush.bf16.msra.mxu0 0
    %833 = vmatpush.bf16.msra.mxu0 0
    %834 = vmatpush.bf16.msra.mxu0 0
    %835 = vmatpush.bf16.msra.mxu0 0
    %836 = vmatpush.bf16.msra.mxu0 0
    %837 = vmatpush.bf16.msra.mxu0 0
    %838 = vmatpush.bf16.msra.mxu0 0
    %839 = vmatpush.bf16.msra.mxu0 %v830
    %840 = vmatmul.bf16.gmra.mxu0 %v826
    %v841 = vpop.f32.mrf.mxu0
    %v842 = vadd.f32 0.0, %v841
    %v843 = vpop.f32.mrf.mxu0
    %844 = vdwg.mxu0
    %v846 = vsel %vm722, %v822, 0
    %v849 = vsel %vm828, %v824, 0
    %851 = vmatpush.bf16.msra.mxu0 0
    %852 = vmatpush.bf16.msra.mxu0 0
    %853 = vmatpush.bf16.msra.mxu0 0
    %854 = vmatpush.bf16.msra.mxu0 0
    %855 = vmatpush.bf16.msra.mxu0 0
    %856 = vmatpush.bf16.msra.mxu0 0
    %857 = vmatpush.bf16.msra.mxu0 0
    %858 = vmatpush.bf16.msra.mxu0 %v849
    %859 = vmatmul.bf16.gmra.mxu0 %v846
    %v860 = vpop.f32.mrf.mxu0
    %v861 = vadd.f32 0.0, %v860
    %v862 = vpop.f32.mrf.mxu0
    %863 = vdwg.mxu0
    %v864 = vmul.f32 %v819, %v842
    %v865 = vmul.f32 %v820, %v861
    %v866 = vsel %vm356, %v864, 0.0
    %v867 = vrot.slane %v866, 4
    %v868 = vadd.f32 %v866, %v867
    %v869 = vrot.slane %v868, 2
    %v870 = vadd.f32 %v868, %v869
    %v871 = vrot.slane %v870, 1
    %v872 = vadd.f32 %v870, %v871
    %v873 = vsel %vm356, %v865, 0.0
    %v874 = vrot.slane %v873, 4
    %v875 = vadd.f32 %v873, %v874
    %v876 = vrot.slane %v875, 2
    %v877 = vadd.f32 %v875, %v876
    %v878 = vrot.slane %v877, 1
    %v879 = vadd.f32 %v877, %v878
    %v880 = vpack.c.bf16 %v872, %v872
    %v881 = vpack.c.bf16 %v879, %v879
    %v882 = vld [vmem:[#allocation21] sm:$0xf]
    %v883 = vld [vmem:[#allocation21 + $0x4] sm:$0xf]
    %v884 = vld [vmem:[#allocation21 + $0x8] sm:$0xf]
    %v885 = vld [vmem:[#allocation21 + $0xc] sm:$0xf]
    %v886 = vld [vmem:[#allocation21 + $0x10] sm:$0xf]
    %v887 = vld [vmem:[#allocation21 + $0x14] sm:$0xf]
    %v888 = vld [vmem:[#allocation21 + $0x18] sm:$0xf]
    %v889 = vld [vmem:[#allocation21 + $0x1c] sm:$0xf]
    %v890 = vld [vmem:[%s14] sm:$0x1]
    %v892 = vperm.slane %v890, 0
    %v896 = vunpack.c.l.b16 %v880
    %v897 = vunpack.c.l.b16 %v881
    %v898 = vsel %vm408, %v897, %v896
    %v899 = vpack.c.b16 %v898, %v898
    %v908 = vunpack.c.l.b16 %v882
    %v909 = vunpack.c.l.b16 %v883
    %v910 = vunpack.c.l.b16 %v884
    %v911 = vunpack.c.l.b16 %v885
    %v912 = vunpack.c.l.b16 %v886
    %v913 = vunpack.c.l.b16 %v887
    %v914 = vunpack.c.l.b16 %v888
    %v915 = vunpack.c.l.b16 %v889
    %v916 = vpack.c.b16 %v909, %v908
    %v917 = vpack.c.b16 %v911, %v910
    %v918 = vpack.c.b16 %v913, %v912
    %v919 = vpack.c.b16 %v915, %v914
    %v925 = vsel %vm356, %v899, 0
    %927 = vmatpush.bf16.msra.mxu0 0
    %928 = vmatpush.bf16.msra.mxu0 0
    %929 = vmatpush.bf16.msra.mxu0 0
    %930 = vmatpush.bf16.msra.mxu0 0
    %931 = vmatpush.bf16.msra.mxu0 %v919
    %932 = vmatpush.bf16.msra.mxu0 %v918
    %933 = vmatpush.bf16.msra.mxu0 %v917
    %934 = vmatpush.bf16.msra.mxu0 %v916
    %935 = vmatmul.bf16.gmra.mxu0 %v925
    %v936 = vpop.f32.mrf.mxu0
    %v937 = vadd.f32 %v892, %v936
    %v938 = vpop.f32.mrf.mxu0
    %939 = vdwg.mxu0
    %v941 = vrot.slane %v937, 1
    %v942 = vperm.slane %v937, 0
    %v943 = vperm.slane %v941, 0
    %v946 = vadd.f32 %v232, %v942
    %v947 = vadd.f32 %v233, %v943
    %s948 = sld [smem:[#allocation2 + $0x1]]
    %v949 = vstv %s948
    %v950 = vadd.f32 %v568, %v949
    %v951 = vadd.f32 %v639, %v949
    %v952 = vadd.f32 %v950, %v716
    %v953 = vadd.f32 %v951, %v717
    %v954 = vsel %vm722, %v952, -inf
    %955 = vmax.xlane.f32.xlu0 %v954
    %v956 = vpop.xlane.xlu0 %955
    %v957 = vsel %vm722, %v953, -inf
    %958 = vmax.xlane.f32.xlu0 %v957
    %v959 = vpop.xlane.xlu0 %958
    %v960 = vrot.slane %v956, 4
    %v961 = vmax.f32 %v956, %v960
    %v962 = vrot.slane %v961, 2
    %v963 = vmax.f32 %v961, %v962
    %v964 = vrot.slane %v963, 1
    %v965 = vmax.f32 %v963, %v964
    %v966 = vrot.slane %v959, 4
    %v967 = vmax.f32 %v959, %v966
    %v968 = vrot.slane %v967, 2
    %v969 = vmax.f32 %v967, %v968
    %v970 = vrot.slane %v969, 1
    %v971 = vmax.f32 %v969, %v970
    %v972 = vsub.f32 %v952, %v965
    %v973 = vsub.f32 %v953, %v971
    %v974 = vmul.f32 %v972, 1.442695
    %v975 = vpow.pop %v974
    %v976 = vmul.f32 %v973, 1.442695
    %v977 = vpow.pop %v976
    %v978 = vsel %vm722, %v975, 0.0
    %979 = vadd.xlane.f32.xlu0 %v978
    %v980 = vpop.xlane.xlu0 %979
    %v981 = vsel %vm722, %v977, 0.0
    %982 = vadd.xlane.f32.xlu0 %v981
    %v983 = vpop.xlane.xlu0 %982
    %v984 = vrot.slane %v980, 4
    %v985 = vadd.f32 %v980, %v984
    %v986 = vrot.slane %v985, 2
    %v987 = vadd.f32 %v985, %v986
    %v988 = vrot.slane %v987, 1
    %v989 = vadd.f32 %v987, %v988
    %v990 = vrot.slane %v983, 4
    %v991 = vadd.f32 %v983, %v990
    %v992 = vrot.slane %v991, 2
    %v993 = vadd.f32 %v991, %v992
    %v994 = vrot.slane %v993, 1
    %v995 = vadd.f32 %v993, %v994
    %v996 = vrcp.pop %v989
    %v997 = vrcp.pop %v995
    %v998 = vmul.f32 %v975, %v996
    %v999 = vmul.f32 %v977, %v997
    %v1000 = vpack.c.bf16 %v947, %v946
    %s1001 = scalar_lea.vmem [#allocation19], 32
    %v1002 = vld [vmem:[%s1001] sm:$0xf]
    %v1003 = vld [vmem:[%s1001 + $0x4] sm:$0xf]
    %v1004 = vld [vmem:[%s1001 + $0x8] sm:$0xf]
    %v1005 = vld [vmem:[%s1001 + $0xc] sm:$0xf]
    %v1006 = vld [vmem:[%s1001 + $0x10] sm:$0xf]
    %v1007 = vld [vmem:[%s1001 + $0x14] sm:$0xf]
    %v1008 = vld [vmem:[%s1001 + $0x18] sm:$0xf]
    %v1009 = vld [vmem:[%s1001 + $0x1c] sm:$0xf]
    %s1010 = scalar_lea.vmem %s12, 1
    %v1011 = vld [vmem:[%s1010] sm:$0x1]
    %v1013 = vperm.slane %v1011, 0
    %v1023 = vunpack.c.l.b16 %v1002
    %v1024 = vunpack.c.l.b16 %v1003
    %v1025 = vunpack.c.l.b16 %v1004
    %v1026 = vunpack.c.l.b16 %v1005
    %v1027 = vunpack.c.l.b16 %v1006
    %v1028 = vunpack.c.l.b16 %v1007
    %v1029 = vunpack.c.l.b16 %v1008
    %v1030 = vunpack.c.l.b16 %v1009
    %v1031 = vpack.c.b16 %v1024, %v1023
    %v1032 = vpack.c.b16 %v1026, %v1025
    %v1033 = vpack.c.b16 %v1028, %v1027
    %v1034 = vpack.c.b16 %v1030, %v1029
    %v1040 = vsel %vm356, %v1000, 0
    %1042 = vmatpush.bf16.msra.mxu0 0
    %1043 = vmatpush.bf16.msra.mxu0 0
    %1044 = vmatpush.bf16.msra.mxu0 0
    %1045 = vmatpush.bf16.msra.mxu0 0
    %1046 = vmatpush.bf16.msra.mxu0 %v1034
    %1047 = vmatpush.bf16.msra.mxu0 %v1033
    %1048 = vmatpush.bf16.msra.mxu0 %v1032
    %1049 = vmatpush.bf16.msra.mxu0 %v1031
    %1050 = vmatmul.bf16.gmra.mxu0 %v1040
    %v1051 = vpop.f32.mrf.mxu0
    %v1052 = vadd.f32 %v1013, %v1051
    %v1053 = vpop.f32.mrf.mxu0
    %v1054 = vadd.f32 %v1013, %v1053
    %1055 = vdwg.mxu0
    %v1056 = vmax.f32 %v1052, 0.0
    %v1057 = vmax.f32 %v1054, 0.0
    %v1058 = vpack.c.bf16 %v998, %v998
    %v1059 = vpack.c.bf16 %v999, %v999
    %v1061 = vunpack.c.l.b16 %v823
    %v1062 = vpack.c.b16 %v1061, %v1061
    %1063 = vrot.lane.b32.xlu0 %v1062, 64
    %v1064 = vpop.permute.xlu0 %1063
    %v1066 = vsel %vm722, %v1058, 0
    %v1069 = vsel %vm828, %v1064, 0
    %1071 = vmatpush.bf16.msra.mxu0 0
    %1072 = vmatpush.bf16.msra.mxu0 0
    %1073 = vmatpush.bf16.msra.mxu0 0
    %1074 = vmatpush.bf16.msra.mxu0 0
    %1075 = vmatpush.bf16.msra.mxu0 0
    %1076 = vmatpush.bf16.msra.mxu0 0
    %1077 = vmatpush.bf16.msra.mxu0 0
    %1078 = vmatpush.bf16.msra.mxu0 %v1069
    %1079 = vmatmul.bf16.gmra.mxu0 %v1066
    %v1080 = vpop.f32.mrf.mxu0
    %v1081 = vadd.f32 0.0, %v1080
    %v1082 = vpop.f32.mrf.mxu0
    %1083 = vdwg.mxu0
    %v1085 = vunpack.c.l.b16 %v824
    %v1086 = vpack.c.b16 %v1085, %v1085
    %1087 = vrot.lane.b32.xlu0 %v1086, 64
    %v1088 = vpop.permute.xlu0 %1087
    %v1090 = vsel %vm722, %v1059, 0
    %v1093 = vsel %vm828, %v1088, 0
    %1095 = vmatpush.bf16.msra.mxu0 0
    %1096 = vmatpush.bf16.msra.mxu0 0
    %1097 = vmatpush.bf16.msra.mxu0 0
    %1098 = vmatpush.bf16.msra.mxu0 0
    %1099 = vmatpush.bf16.msra.mxu0 0
    %1100 = vmatpush.bf16.msra.mxu0 0
    %1101 = vmatpush.bf16.msra.mxu0 0
    %1102 = vmatpush.bf16.msra.mxu0 %v1093
    %1103 = vmatmul.bf16.gmra.mxu0 %v1090
    %v1104 = vpop.f32.mrf.mxu0
    %v1105 = vadd.f32 0.0, %v1104
    %v1106 = vpop.f32.mrf.mxu0
    %1107 = vdwg.mxu0
    %v1108 = vmul.f32 %v1056, %v1081
    %v1109 = vmul.f32 %v1057, %v1105
    %v1110 = vsel %vm356, %v1108, 0.0
    %v1111 = vrot.slane %v1110, 4
    %v1112 = vadd.f32 %v1110, %v1111
    %v1113 = vrot.slane %v1112, 2
    %v1114 = vadd.f32 %v1112, %v1113
    %v1115 = vrot.slane %v1114, 1
    %v1116 = vadd.f32 %v1114, %v1115
    %v1117 = vsel %vm356, %v1109, 0.0
    %v1118 = vrot.slane %v1117, 4
    %v1119 = vadd.f32 %v1117, %v1118
    %v1120 = vrot.slane %v1119, 2
    %v1121 = vadd.f32 %v1119, %v1120
    %v1122 = vrot.slane %v1121, 1
    %v1123 = vadd.f32 %v1121, %v1122
    %v1124 = vpack.c.bf16 %v1116, %v1116
    %v1125 = vpack.c.bf16 %v1123, %v1123
    %s1126 = scalar_lea.vmem [#allocation21], 32
    %v1127 = vld [vmem:[%s1126] sm:$0xf]
    %v1128 = vld [vmem:[%s1126 + $0x4] sm:$0xf]
    %v1129 = vld [vmem:[%s1126 + $0x8] sm:$0xf]
    %v1130 = vld [vmem:[%s1126 + $0xc] sm:$0xf]
    %v1131 = vld [vmem:[%s1126 + $0x10] sm:$0xf]
    %v1132 = vld [vmem:[%s1126 + $0x14] sm:$0xf]
    %v1133 = vld [vmem:[%s1126 + $0x18] sm:$0xf]
    %v1134 = vld [vmem:[%s1126 + $0x1c] sm:$0xf]
    %s1135 = scalar_lea.vmem %s14, 1
    %v1136 = vld [vmem:[%s1135] sm:$0x1]
    %v1138 = vperm.slane %v1136, 0
    %v1142 = vunpack.c.l.b16 %v1124
    %v1143 = vunpack.c.l.b16 %v1125
    %v1144 = vsel %vm408, %v1143, %v1142
    %v1145 = vpack.c.b16 %v1144, %v1144
    %v1154 = vunpack.c.l.b16 %v1127
    %v1155 = vunpack.c.l.b16 %v1128
    %v1156 = vunpack.c.l.b16 %v1129
    %v1157 = vunpack.c.l.b16 %v1130
    %v1158 = vunpack.c.l.b16 %v1131
    %v1159 = vunpack.c.l.b16 %v1132
    %v1160 = vunpack.c.l.b16 %v1133
    %v1161 = vunpack.c.l.b16 %v1134
    %v1162 = vpack.c.b16 %v1155, %v1154
    %v1163 = vpack.c.b16 %v1157, %v1156
    %v1164 = vpack.c.b16 %v1159, %v1158
    %v1165 = vpack.c.b16 %v1161, %v1160
    %v1171 = vsel %vm356, %v1145, 0
    %1173 = vmatpush.bf16.msra.mxu0 0
    %1174 = vmatpush.bf16.msra.mxu0 0
    %1175 = vmatpush.bf16.msra.mxu0 0
    %1176 = vmatpush.bf16.msra.mxu0 0
    %1177 = vmatpush.bf16.msra.mxu0 %v1165
    %1178 = vmatpush.bf16.msra.mxu0 %v1164
    %1179 = vmatpush.bf16.msra.mxu0 %v1163
    %1180 = vmatpush.bf16.msra.mxu0 %v1162
    %1181 = vmatmul.bf16.gmra.mxu0 %v1171
    %v1182 = vpop.f32.mrf.mxu0
    %v1183 = vadd.f32 %v1138, %v1182
    %v1184 = vpop.f32.mrf.mxu0
    %1185 = vdwg.mxu0
    %v1187 = vrot.slane %v1183, 1
    %v1188 = vperm.slane %v1183, 0
    %v1189 = vperm.slane %v1187, 0
    %v1192 = vadd.f32 %v946, %v1188
    %v1193 = vadd.f32 %v947, %v1189
    %s1194 = sld [smem:[#allocation2 + $0x2]]
    %v1195 = vstv %s1194
    %v1196 = vadd.f32 %v571, %v1195
    %v1197 = vadd.f32 %v642, %v1195
    %v1198 = vadd.f32 %v1196, %v716
    %v1199 = vadd.f32 %v1197, %v717
    %v1200 = vsel %vm722, %v1198, -inf
    %1201 = vmax.xlane.f32.xlu0 %v1200
    %v1202 = vpop.xlane.xlu0 %1201
    %v1203 = vsel %vm722, %v1199, -inf
    %1204 = vmax.xlane.f32.xlu0 %v1203
    %v1205 = vpop.xlane.xlu0 %1204
    %v1206 = vrot.slane %v1202, 4
    %v1207 = vmax.f32 %v1202, %v1206
    %v1208 = vrot.slane %v1207, 2
    %v1209 = vmax.f32 %v1207, %v1208
    %v1210 = vrot.slane %v1209, 1
    %v1211 = vmax.f32 %v1209, %v1210
    %v1212 = vrot.slane %v1205, 4
    %v1213 = vmax.f32 %v1205, %v1212
    %v1214 = vrot.slane %v1213, 2
    %v1215 = vmax.f32 %v1213, %v1214
    %v1216 = vrot.slane %v1215, 1
    %v1217 = vmax.f32 %v1215, %v1216
    %v1218 = vsub.f32 %v1198, %v1211
    %v1219 = vsub.f32 %v1199, %v1217
    %v1220 = vmul.f32 %v1218, 1.442695
    %v1221 = vpow.pop %v1220
    %v1222 = vmul.f32 %v1219, 1.442695
    %v1223 = vpow.pop %v1222
    %v1224 = vsel %vm722, %v1221, 0.0
    %1225 = vadd.xlane.f32.xlu0 %v1224
    %v1226 = vpop.xlane.xlu0 %1225
    %v1227 = vsel %vm722, %v1223, 0.0
    %1228 = vadd.xlane.f32.xlu0 %v1227
    %v1229 = vpop.xlane.xlu0 %1228
    %v1230 = vrot.slane %v1226, 4
    %v1231 = vadd.f32 %v1226, %v1230
    %v1232 = vrot.slane %v1231, 2
    %v1233 = vadd.f32 %v1231, %v1232
    %v1234 = vrot.slane %v1233, 1
    %v1235 = vadd.f32 %v1233, %v1234
    %v1236 = vrot.slane %v1229, 4
    %v1237 = vadd.f32 %v1229, %v1236
    %v1238 = vrot.slane %v1237, 2
    %v1239 = vadd.f32 %v1237, %v1238
    %v1240 = vrot.slane %v1239, 1
    %v1241 = vadd.f32 %v1239, %v1240
    %v1242 = vrcp.pop %v1235
    %v1243 = vrcp.pop %v1241
    %v1244 = vmul.f32 %v1221, %v1242
    %v1245 = vmul.f32 %v1223, %v1243
    %v1246 = vpack.c.bf16 %v1193, %v1192
    %s1247 = scalar_lea.vmem [#allocation19], 64
    %v1248 = vld [vmem:[%s1247] sm:$0xf]
    %v1249 = vld [vmem:[%s1247 + $0x4] sm:$0xf]
    %v1250 = vld [vmem:[%s1247 + $0x8] sm:$0xf]
    %v1251 = vld [vmem:[%s1247 + $0xc] sm:$0xf]
    %v1252 = vld [vmem:[%s1247 + $0x10] sm:$0xf]
    %v1253 = vld [vmem:[%s1247 + $0x14] sm:$0xf]
    %v1254 = vld [vmem:[%s1247 + $0x18] sm:$0xf]
    %v1255 = vld [vmem:[%s1247 + $0x1c] sm:$0xf]
    %s1256 = scalar_lea.vmem %s12, 2
    %v1257 = vld [vmem:[%s1256] sm:$0x1]
    %v1259 = vperm.slane %v1257, 0
    %v1269 = vunpack.c.l.b16 %v1248
    %v1270 = vunpack.c.l.b16 %v1249
    %v1271 = vunpack.c.l.b16 %v1250
    %v1272 = vunpack.c.l.b16 %v1251
    %v1273 = vunpack.c.l.b16 %v1252
    %v1274 = vunpack.c.l.b16 %v1253
    %v1275 = vunpack.c.l.b16 %v1254
    %v1276 = vunpack.c.l.b16 %v1255
    %v1277 = vpack.c.b16 %v1270, %v1269
    %v1278 = vpack.c.b16 %v1272, %v1271
    %v1279 = vpack.c.b16 %v1274, %v1273
    %v1280 = vpack.c.b16 %v1276, %v1275
    %v1286 = vsel %vm356, %v1246, 0
    %1288 = vmatpush.bf16.msra.mxu0 0
    %1289 = vmatpush.bf16.msra.mxu0 0
    %1290 = vmatpush.bf16.msra.mxu0 0
    %1291 = vmatpush.bf16.msra.mxu0 0
    %1292 = vmatpush.bf16.msra.mxu0 %v1280
    %1293 = vmatpush.bf16.msra.mxu0 %v1279
    %1294 = vmatpush.bf16.msra.mxu0 %v1278
    %1295 = vmatpush.bf16.msra.mxu0 %v1277
    %1296 = vmatmul.bf16.gmra.mxu0 %v1286
    %v1297 = vpop.f32.mrf.mxu0
    %v1298 = vadd.f32 %v1259, %v1297
    %v1299 = vpop.f32.mrf.mxu0
    %v1300 = vadd.f32 %v1259, %v1299
    %1301 = vdwg.mxu0
    %v1302 = vmax.f32 %v1298, 0.0
    %v1303 = vmax.f32 %v1300, 0.0
    %v1304 = vpack.c.bf16 %v1244, %v1244
    %v1305 = vpack.c.bf16 %v1245, %v1245
    %v1306 = vpack.c.bf16 %v707, %v707
    %v1307 = vpack.c.bf16 %v709, %v709
    %v1309 = vsel %vm722, %v1304, 0
    %v1312 = vsel %vm828, %v1306, 0
    %1314 = vmatpush.bf16.msra.mxu0 0
    %1315 = vmatpush.bf16.msra.mxu0 0
    %1316 = vmatpush.bf16.msra.mxu0 0
    %1317 = vmatpush.bf16.msra.mxu0 0
    %1318 = vmatpush.bf16.msra.mxu0 0
    %1319 = vmatpush.bf16.msra.mxu0 0
    %1320 = vmatpush.bf16.msra.mxu0 0
    %1321 = vmatpush.bf16.msra.mxu0 %v1312
    %1322 = vmatmul.bf16.gmra.mxu0 %v1309
    %v1323 = vpop.f32.mrf.mxu0
    %v1324 = vadd.f32 0.0, %v1323
    %v1325 = vpop.f32.mrf.mxu0
    %1326 = vdwg.mxu0
    %v1328 = vsel %vm722, %v1305, 0
    %v1331 = vsel %vm828, %v1307, 0
    %1333 = vmatpush.bf16.msra.mxu0 0
    %1334 = vmatpush.bf16.msra.mxu0 0
    %1335 = vmatpush.bf16.msra.mxu0 0
    %1336 = vmatpush.bf16.msra.mxu0 0
    %1337 = vmatpush.bf16.msra.mxu0 0
    %1338 = vmatpush.bf16.msra.mxu0 0
    %1339 = vmatpush.bf16.msra.mxu0 0
    %1340 = vmatpush.bf16.msra.mxu0 %v1331
    %1341 = vmatmul.bf16.gmra.mxu0 %v1328
    %v1342 = vpop.f32.mrf.mxu0
    %v1343 = vadd.f32 0.0, %v1342
    %v1344 = vpop.f32.mrf.mxu0
    %1345 = vdwg.mxu0
    %v1346 = vmul.f32 %v1302, %v1324
    %v1347 = vmul.f32 %v1303, %v1343
    %v1348 = vsel %vm356, %v1346, 0.0
    %v1349 = vrot.slane %v1348, 4
    %v1350 = vadd.f32 %v1348, %v1349
    %v1351 = vrot.slane %v1350, 2
    %v1352 = vadd.f32 %v1350, %v1351
    %v1353 = vrot.slane %v1352, 1
    %v1354 = vadd.f32 %v1352, %v1353
    %v1355 = vsel %vm356, %v1347, 0.0
    %v1356 = vrot.slane %v1355, 4
    %v1357 = vadd.f32 %v1355, %v1356
    %v1358 = vrot.slane %v1357, 2
    %v1359 = vadd.f32 %v1357, %v1358
    %v1360 = vrot.slane %v1359, 1
    %v1361 = vadd.f32 %v1359, %v1360
    %v1362 = vpack.c.bf16 %v1354, %v1354
    %v1363 = vpack.c.bf16 %v1361, %v1361
    %s1364 = scalar_lea.vmem [#allocation21], 64
    %v1365 = vld [vmem:[%s1364] sm:$0xf]
    %v1366 = vld [vmem:[%s1364 + $0x4] sm:$0xf]
    %v1367 = vld [vmem:[%s1364 + $0x8] sm:$0xf]
    %v1368 = vld [vmem:[%s1364 + $0xc] sm:$0xf]
    %v1369 = vld [vmem:[%s1364 + $0x10] sm:$0xf]
    %v1370 = vld [vmem:[%s1364 + $0x14] sm:$0xf]
    %v1371 = vld [vmem:[%s1364 + $0x18] sm:$0xf]
    %v1372 = vld [vmem:[%s1364 + $0x1c] sm:$0xf]
    %s1373 = scalar_lea.vmem %s14, 2
    %v1374 = vld [vmem:[%s1373] sm:$0x1]
    %v1376 = vperm.slane %v1374, 0
    %v1380 = vunpack.c.l.b16 %v1362
    %v1381 = vunpack.c.l.b16 %v1363
    %v1382 = vsel %vm408, %v1381, %v1380
    %v1383 = vpack.c.b16 %v1382, %v1382
    %v1392 = vunpack.c.l.b16 %v1365
    %v1393 = vunpack.c.l.b16 %v1366
    %v1394 = vunpack.c.l.b16 %v1367
    %v1395 = vunpack.c.l.b16 %v1368
    %v1396 = vunpack.c.l.b16 %v1369
    %v1397 = vunpack.c.l.b16 %v1370
    %v1398 = vunpack.c.l.b16 %v1371
    %v1399 = vunpack.c.l.b16 %v1372
    %v1400 = vpack.c.b16 %v1393, %v1392
    %v1401 = vpack.c.b16 %v1395, %v1394
    %v1402 = vpack.c.b16 %v1397, %v1396
    %v1403 = vpack.c.b16 %v1399, %v1398
    %v1409 = vsel %vm356, %v1383, 0
    %1411 = vmatpush.bf16.msra.mxu0 0
    %1412 = vmatpush.bf16.msra.mxu0 0
    %1413 = vmatpush.bf16.msra.mxu0 0
    %1414 = vmatpush.bf16.msra.mxu0 0
    %1415 = vmatpush.bf16.msra.mxu0 %v1403
    %1416 = vmatpush.bf16.msra.mxu0 %v1402
    %1417 = vmatpush.bf16.msra.mxu0 %v1401
    %1418 = vmatpush.bf16.msra.mxu0 %v1400
    %1419 = vmatmul.bf16.gmra.mxu0 %v1409
    %v1420 = vpop.f32.mrf.mxu0
    %v1421 = vadd.f32 %v1376, %v1420
    %v1422 = vpop.f32.mrf.mxu0
    %1423 = vdwg.mxu0
    %v1425 = vrot.slane %v1421, 1
    %v1426 = vperm.slane %v1421, 0
    %v1427 = vperm.slane %v1425, 0
    %v1430 = vadd.f32 %v1192, %v1426
    %v1431 = vadd.f32 %v1193, %v1427
    %s1432 = sld [smem:[#allocation2 + $0x3]]
    %v1433 = vstv %s1432
    %v1434 = vadd.f32 %v573, %v1433
    %v1435 = vadd.f32 %v644, %v1433
    %v1436 = vadd.f32 %v1434, %v716
    %v1437 = vadd.f32 %v1435, %v717
    %v1438 = vsel %vm722, %v1436, -inf
    %1439 = vmax.xlane.f32.xlu0 %v1438
    %v1440 = vpop.xlane.xlu0 %1439
    %v1441 = vsel %vm722, %v1437, -inf
    %1442 = vmax.xlane.f32.xlu0 %v1441
    %v1443 = vpop.xlane.xlu0 %1442
    %v1444 = vrot.slane %v1440, 4
    %v1445 = vmax.f32 %v1440, %v1444
    %v1446 = vrot.slane %v1445, 2
    %v1447 = vmax.f32 %v1445, %v1446
    %v1448 = vrot.slane %v1447, 1
    %v1449 = vmax.f32 %v1447, %v1448
    %v1450 = vrot.slane %v1443, 4
    %v1451 = vmax.f32 %v1443, %v1450
    %v1452 = vrot.slane %v1451, 2
    %v1453 = vmax.f32 %v1451, %v1452
    %v1454 = vrot.slane %v1453, 1
    %v1455 = vmax.f32 %v1453, %v1454
    %v1456 = vsub.f32 %v1436, %v1449
    %v1457 = vsub.f32 %v1437, %v1455
    %v1458 = vmul.f32 %v1456, 1.442695
    %v1459 = vpow.pop %v1458
    %v1460 = vmul.f32 %v1457, 1.442695
    %v1461 = vpow.pop %v1460
    %v1462 = vsel %vm722, %v1459, 0.0
    %1463 = vadd.xlane.f32.xlu0 %v1462
    %v1464 = vpop.xlane.xlu0 %1463
    %v1465 = vsel %vm722, %v1461, 0.0
    %1466 = vadd.xlane.f32.xlu0 %v1465
    %v1467 = vpop.xlane.xlu0 %1466
    %v1468 = vrot.slane %v1464, 4
    %v1469 = vadd.f32 %v1464, %v1468
    %v1470 = vrot.slane %v1469, 2
    %v1471 = vadd.f32 %v1469, %v1470
    %v1472 = vrot.slane %v1471, 1
    %v1473 = vadd.f32 %v1471, %v1472
    %v1474 = vrot.slane %v1467, 4
    %v1475 = vadd.f32 %v1467, %v1474
    %v1476 = vrot.slane %v1475, 2
    %v1477 = vadd.f32 %v1475, %v1476
    %v1478 = vrot.slane %v1477, 1
    %v1479 = vadd.f32 %v1477, %v1478
    %v1480 = vrcp.pop %v1473
    %v1481 = vrcp.pop %v1479
    %v1482 = vmul.f32 %v1459, %v1480
    %v1483 = vmul.f32 %v1461, %v1481
    %v1484 = vpack.c.bf16 %v1431, %v1430
    %s1485 = scalar_lea.vmem [#allocation19], 96
    %v1486 = vld [vmem:[%s1485] sm:$0xf]
    %v1487 = vld [vmem:[%s1485 + $0x4] sm:$0xf]
    %v1488 = vld [vmem:[%s1485 + $0x8] sm:$0xf]
    %v1489 = vld [vmem:[%s1485 + $0xc] sm:$0xf]
    %v1490 = vld [vmem:[%s1485 + $0x10] sm:$0xf]
    %v1491 = vld [vmem:[%s1485 + $0x14] sm:$0xf]
    %v1492 = vld [vmem:[%s1485 + $0x18] sm:$0xf]
    %v1493 = vld [vmem:[%s1485 + $0x1c] sm:$0xf]
    %s1494 = scalar_lea.vmem %s12, 3
    %v1495 = vld [vmem:[%s1494] sm:$0x1]
    %v1497 = vperm.slane %v1495, 0
    %v1507 = vunpack.c.l.b16 %v1486
    %v1508 = vunpack.c.l.b16 %v1487
    %v1509 = vunpack.c.l.b16 %v1488
    %v1510 = vunpack.c.l.b16 %v1489
    %v1511 = vunpack.c.l.b16 %v1490
    %v1512 = vunpack.c.l.b16 %v1491
    %v1513 = vunpack.c.l.b16 %v1492
    %v1514 = vunpack.c.l.b16 %v1493
    %v1515 = vpack.c.b16 %v1508, %v1507
    %v1516 = vpack.c.b16 %v1510, %v1509
    %v1517 = vpack.c.b16 %v1512, %v1511
    %v1518 = vpack.c.b16 %v1514, %v1513
    %v1524 = vsel %vm356, %v1484, 0
    %1526 = vmatpush.bf16.msra.mxu0 0
    %1527 = vmatpush.bf16.msra.mxu0 0
    %1528 = vmatpush.bf16.msra.mxu0 0
    %1529 = vmatpush.bf16.msra.mxu0 0
    %1530 = vmatpush.bf16.msra.mxu0 %v1518
    %1531 = vmatpush.bf16.msra.mxu0 %v1517
    %1532 = vmatpush.bf16.msra.mxu0 %v1516
    %1533 = vmatpush.bf16.msra.mxu0 %v1515
    %1534 = vmatmul.bf16.gmra.mxu0 %v1524
    %v1535 = vpop.f32.mrf.mxu0
    %v1536 = vadd.f32 %v1497, %v1535
    %v1537 = vpop.f32.mrf.mxu0
    %v1538 = vadd.f32 %v1497, %v1537
    %1539 = vdwg.mxu0
    %v1540 = vmax.f32 %v1536, 0.0
    %v1541 = vmax.f32 %v1538, 0.0
    %v1542 = vpack.c.bf16 %v1482, %v1482
    %v1543 = vpack.c.bf16 %v1483, %v1483
    %v1545 = vunpack.c.l.b16 %v1306
    %v1546 = vpack.c.b16 %v1545, %v1545
    %1547 = vrot.lane.b32.xlu0 %v1546, 64
    %v1548 = vpop.permute.xlu0 %1547
    %v1550 = vsel %vm722, %v1542, 0
    %v1553 = vsel %vm828, %v1548, 0
    %1555 = vmatpush.bf16.msra.mxu0 0
    %1556 = vmatpush.bf16.msra.mxu0 0
    %1557 = vmatpush.bf16.msra.mxu0 0
    %1558 = vmatpush.bf16.msra.mxu0 0
    %1559 = vmatpush.bf16.msra.mxu0 0
    %1560 = vmatpush.bf16.msra.mxu0 0
    %1561 = vmatpush.bf16.msra.mxu0 0
    %1562 = vmatpush.bf16.msra.mxu0 %v1553
    %1563 = vmatmul.bf16.gmra.mxu0 %v1550
    %v1564 = vpop.f32.mrf.mxu0
    %v1565 = vadd.f32 0.0, %v1564
    %v1566 = vpop.f32.mrf.mxu0
    %1567 = vdwg.mxu0
    %v1569 = vunpack.c.l.b16 %v1307
    %v1570 = vpack.c.b16 %v1569, %v1569
    %1571 = vrot.lane.b32.xlu0 %v1570, 64
    %v1572 = vpop.permute.xlu0 %1571
    %v1574 = vsel %vm722, %v1543, 0
    %v1577 = vsel %vm828, %v1572, 0
    %1579 = vmatpush.bf16.msra.mxu0 0
    %1580 = vmatpush.bf16.msra.mxu0 0
    %1581 = vmatpush.bf16.msra.mxu0 0
    %1582 = vmatpush.bf16.msra.mxu0 0
    %1583 = vmatpush.bf16.msra.mxu0 0
    %1584 = vmatpush.bf16.msra.mxu0 0
    %1585 = vmatpush.bf16.msra.mxu0 0
    %1586 = vmatpush.bf16.msra.mxu0 %v1577
    %1587 = vmatmul.bf16.gmra.mxu0 %v1574
    %v1588 = vpop.f32.mrf.mxu0
    %v1589 = vadd.f32 0.0, %v1588
    %v1590 = vpop.f32.mrf.mxu0
    %1591 = vdwg.mxu0
    %v1592 = vmul.f32 %v1540, %v1565
    %v1593 = vmul.f32 %v1541, %v1589
    %v1594 = vsel %vm356, %v1592, 0.0
    %v1595 = vrot.slane %v1594, 4
    %v1596 = vadd.f32 %v1594, %v1595
    %v1597 = vrot.slane %v1596, 2
    %v1598 = vadd.f32 %v1596, %v1597
    %v1599 = vrot.slane %v1598, 1
    %v1600 = vadd.f32 %v1598, %v1599
    %v1601 = vsel %vm356, %v1593, 0.0
    %v1602 = vrot.slane %v1601, 4
    %v1603 = vadd.f32 %v1601, %v1602
    %v1604 = vrot.slane %v1603, 2
    %v1605 = vadd.f32 %v1603, %v1604
    %v1606 = vrot.slane %v1605, 1
    %v1607 = vadd.f32 %v1605, %v1606
    %v1608 = vpack.c.bf16 %v1600, %v1600
    %v1609 = vpack.c.bf16 %v1607, %v1607
    %s1610 = scalar_lea.vmem [#allocation21], 96
    %v1611 = vld [vmem:[%s1610] sm:$0xf]
    %v1612 = vld [vmem:[%s1610 + $0x4] sm:$0xf]
    %v1613 = vld [vmem:[%s1610 + $0x8] sm:$0xf]
    %v1614 = vld [vmem:[%s1610 + $0xc] sm:$0xf]
    %v1615 = vld [vmem:[%s1610 + $0x10] sm:$0xf]
    %v1616 = vld [vmem:[%s1610 + $0x14] sm:$0xf]
    %v1617 = vld [vmem:[%s1610 + $0x18] sm:$0xf]
    %v1618 = vld [vmem:[%s1610 + $0x1c] sm:$0xf]
    %s1619 = scalar_lea.vmem %s14, 3
    %v1620 = vld [vmem:[%s1619] sm:$0x1]
    %v1622 = vperm.slane %v1620, 0
    %v1626 = vunpack.c.l.b16 %v1608
    %v1627 = vunpack.c.l.b16 %v1609
    %v1628 = vsel %vm408, %v1627, %v1626
    %v1629 = vpack.c.b16 %v1628, %v1628
    %v1638 = vunpack.c.l.b16 %v1611
    %v1639 = vunpack.c.l.b16 %v1612
    %v1640 = vunpack.c.l.b16 %v1613
    %v1641 = vunpack.c.l.b16 %v1614
    %v1642 = vunpack.c.l.b16 %v1615
    %v1643 = vunpack.c.l.b16 %v1616
    %v1644 = vunpack.c.l.b16 %v1617
    %v1645 = vunpack.c.l.b16 %v1618
    %v1646 = vpack.c.b16 %v1639, %v1638
    %v1647 = vpack.c.b16 %v1641, %v1640
    %v1648 = vpack.c.b16 %v1643, %v1642
    %v1649 = vpack.c.b16 %v1645, %v1644
    %v1655 = vsel %vm356, %v1629, 0
    %1657 = vmatpush.bf16.msra.mxu0 0
    %1658 = vmatpush.bf16.msra.mxu0 0
    %1659 = vmatpush.bf16.msra.mxu0 0
    %1660 = vmatpush.bf16.msra.mxu0 0
    %1661 = vmatpush.bf16.msra.mxu0 %v1649
    %1662 = vmatpush.bf16.msra.mxu0 %v1648
    %1663 = vmatpush.bf16.msra.mxu0 %v1647
    %1664 = vmatpush.bf16.msra.mxu0 %v1646
    %1665 = vmatmul.bf16.gmra.mxu0 %v1655
    %v1666 = vpop.f32.mrf.mxu0
    %v1667 = vadd.f32 %v1622, %v1666
    %v1668 = vpop.f32.mrf.mxu0
    %1669 = vdwg.mxu0
    %v1671 = vrot.slane %v1667, 1
    %v1672 = vperm.slane %v1667, 0
    %v1673 = vperm.slane %v1671, 0
    %v1676 = vadd.f32 %v1430, %v1672
    %v1677 = vadd.f32 %v1431, %v1673
    %v1678 = vsel %vm356, %v1676, 0.0
    %v1679 = vrot.slane %v1678, 4
    %v1680 = vadd.f32 %v1678, %v1679
    %v1681 = vrot.slane %v1680, 2
    %v1682 = vadd.f32 %v1680, %v1681
    %v1683 = vrot.slane %v1682, 1
    %v1684 = vadd.f32 %v1682, %v1683
    %v1685 = vsel %vm356, %v1677, 0.0
    %v1686 = vrot.slane %v1685, 4
    %v1687 = vadd.f32 %v1685, %v1686
    %v1688 = vrot.slane %v1687, 2
    %v1689 = vadd.f32 %v1687, %v1688
    %v1690 = vrot.slane %v1689, 1
    %v1691 = vadd.f32 %v1689, %v1690
    %v1694 = vsel %vm408, %v1691, %v1684
    %vm1696 = vcmask 517120
    %1697 = vst.msk [vmem:[#allocation22] sm:$0x3] %vm1696, %v1694
    // Predicated region
    $region110: #{tpu_custom_call.1} parent=1 // pred_check
      _
    $region111: #{tpu_custom_call.1} parent=1 // pred_check_branch
      %1699 = sbr.rel (0) target = $region113
    $region112: #{tpu_custom_call.1} parent=1 // pred_region
      %1701 = vsyncadd [#allocation4], 0
      %s1703 = sshll.u32 [#allocation22], 4
      %s1704 = int_to_ptr.vmem [resolvable:$true] %s1703
      %s1705 = sshll.u32 %s15, 4
      %s1706 = int_to_ptr.hbm [resolvable:$true] %s1705
      %1708 = dma.vmem_to_hbm [thread:$0]  %s1704, 32, %s1706, [#allocation4]
    $region113: #{tpu_custom_call.1} parent=1 // pred_fallthru
      _
    // Predicated region
    $region114: #{tpu_custom_call.1} parent=1 // pred_check
      _
    $region115: #{tpu_custom_call.1} parent=1 // pred_check_branch
      %1710 = sbr.rel (0) target = $region117
    $region116: #{tpu_custom_call.1} parent=1 // pred_region
      %1712 = dma.done [#allocation4], 32
    $region117: #{tpu_custom_call.1} parent=1 // pred_fallthru
      _
    %1713 = vsyncpa [#allocation3], 1
    %1714 = vsyncpa [#allocation8], 1
    %1715 = vsyncpa [#allocation11], 1
    %1716 = vsyncpa [#allocation14], 1
    %1717 = vsyncpa [#allocation17], 1
    %1718 = vsyncpa [#allocation20], 1
    %1719 = vsyncpa [#allocation4], 1
    %1720 = vsyncpa [#allocation5], 1

</llo_original>
